<compile_context>
chip_gen: v6e
topology: v6e:2x2x1
jax: 0.10.0
libtpu: 0.0.40
codegen_flags: <defaults>
</compile_context>

<pallas_src>
import functools
import math
import jax
import jax.numpy as jnp
from jax import lax
from jax.experimental import pallas as pl
from jax.experimental.pallas import tpu as pltpu


MLP_LANES = 128  # one lane-width covers all MLP output widths (32, 64, 1)


def _ru8(v):
    return (v + 7) // 8 * 8


def _mlp_offsets(n_s):
    """Sublane-aligned row offsets of each MLP tensor inside the MLP slab."""
    r_w1 = 0
    r_b1 = _ru8(r_w1 + n_s)
    r_w2 = _ru8(r_b1 + 1)
    r_b2 = _ru8(r_w2 + 32)
    r_w3 = _ru8(r_b2 + 1)
    r_b3 = _ru8(r_w3 + 64)
    rows = _ru8(r_b3 + 1)
    return r_w1, r_b1, r_w2, r_b2, r_w3, r_b3, rows


def critic_kernel(x_ref, lstm_ref, mlp_ref, out_ref, *, seq_len, batch, n_s):
    ng = 4 * n_s
    r_w1, r_b1, r_w2, r_b2, r_w3, r_b3, _ = _mlp_offsets(n_s)

    # ---- LSTM slab views (static, sublane-aligned slices) ------------------
    w_ih = lstm_ref[0:n_s, :]                       # (n_s, 4n_s)
    w_hh = lstm_ref[n_s:2 * n_s, :]                 # (n_s, 4n_s)
    b_lstm = lstm_ref[2 * n_s:2 * n_s + 1, :]       # (1,   4n_s)

    # ---- Hoisted input projection: ONE MXU matmul for all timesteps --------
    # x_ref is (seq_len*batch, n_s); gates_in[t*B:(t+1)*B] = x_t @ W_ih + b
    gates_in = jnp.dot(x_ref[...], w_ih,
                       preferred_element_type=jnp.float32) + b_lstm

    # Lane mask selecting the g-gate columns (tanh); others use sigmoid.
    # Hoisted out of the loop (JAX does not CSE broadcasts).
    lane = lax.broadcasted_iota(jnp.int32, (batch, ng), 1)
    g_mask = (lane >= 2 * n_s) & (lane < 3 * n_s)

    h = jnp.zeros((batch, n_s), jnp.float32)
    c = jnp.zeros((batch, n_s), jnp.float32)

    # ---- Fully-unrolled serial recurrence -----------------------------------
    # Only h @ W_hh -> activation -> elementwise sits on the per-step chain;
    # gates_in slices are h-independent and scheduled off the critical path.
    for t in range(seq_len):
        gates = gates_in[t * batch:(t + 1) * batch, :] + jnp.dot(
            h, w_hh, preferred_element_type=jnp.float32)
        # Single full-width EUP tanh pass: sigmoid(x) = 0.5*tanh(0.5*x) + 0.5.
        pre = jnp.where(g_mask, gates, 0.5 * gates)
        th = jnp.tanh(pre)
        act = jnp.where(g_mask, th, 0.5 * th + 0.5)
        # Per-gate lane slices (XLU realignments; throughput-free, audited as
        # acceptable latency filler for this tiny per-step chain).
        i = act[:, 0 * n_s:1 * n_s]
        f = act[:, 1 * n_s:2 * n_s]
        g = act[:, 2 * n_s:3 * n_s]
        o = act[:, 3 * n_s:4 * n_s]
        c = f * c + i * g
        h = o * jnp.tanh(c)

    # ---- MLP head: fc1 -> relu -> fc2 -> relu -> out (128-lane padded) -----
    w1 = mlp_ref[r_w1:r_w1 + n_s, :]                # (n_s, 128), cols 32: zero
    b1 = mlp_ref[r_b1:r_b1 + 1, :]
    z1 = jnp.maximum(
        jnp.dot(h, w1, preferred_element_type=jnp.float32) + b1, 0.0)

    w2 = mlp_ref[r_w2:r_w2 + 32, :]                 # (32, 128), cols 64: zero
    b2 = mlp_ref[r_b2:r_b2 + 1, :]
    z2 = jnp.maximum(
        jnp.dot(z1[:, :32], w2, preferred_element_type=jnp.float32) + b2, 0.0)

    w3 = mlp_ref[r_w3:r_w3 + 64, :]                 # (64, 128), col 0 = weights
    b3 = mlp_ref[r_b3:r_b3 + 1, :]
    # Lane-dense (batch, 128) store; the value lives in column 0.
    out_ref[...] = jnp.dot(z2[:, :64], w3,
                           preferred_element_type=jnp.float32) + b3


def pack_params(params, n_s):
    """Pack the 9 weight/bias tensors into two f32 slabs (done once, offline)."""
    ng = 4 * n_s

    # --- LSTM slab: [ w_ih_t ; w_hh_t ; b_lstm ] row-stacked ---------------
    rows_a = _ru8(2 * n_s + 1)
    lstm_w = jnp.zeros((rows_a, ng), jnp.float32)
    lstm_w = lstm_w.at[0:n_s, :].set(params["w_ih_t"])
    lstm_w = lstm_w.at[n_s:2 * n_s, :].set(params["w_hh_t"])
    lstm_w = lstm_w.at[2 * n_s, :].set(params["b_lstm"][0])

    # --- MLP slab: all tensors zero-padded to 128 lanes, row-stacked --------
    r_w1, r_b1, r_w2, r_b2, r_w3, r_b3, rows_b = _mlp_offsets(n_s)
    mlp_w = jnp.zeros((rows_b, MLP_LANES), jnp.float32)
    mlp_w = mlp_w.at[r_w1:r_w1 + n_s, 0:32].set(params["w1_t"])
    mlp_w = mlp_w.at[r_b1, 0:32].set(params["b1"][0])
    mlp_w = mlp_w.at[r_w2:r_w2 + 32, 0:64].set(params["w2_t"])
    mlp_w = mlp_w.at[r_b2, 0:64].set(params["b2"][0])
    mlp_w = mlp_w.at[r_w3:r_w3 + 64, 0:1].set(params["w3_t"])
    mlp_w = mlp_w.at[r_b3, 0:1].set(params["b3"][0])
    return lstm_w, mlp_w


def critic_forward(x, lstm_w, mlp_w):
    """x: (seq_len, batch, n_s) f32; packed slabs -> value: (batch, 1) f32."""
    seq_len, batch, n_s = x.shape
    # Reshape only (no-copy); no batch pad - full-array VMEM specs are exempt
    # from the (8,128) divisibility rule and the layout pads sublanes anyway.
    x2d = x.reshape(seq_len * batch, n_s)

    kernel = functools.partial(critic_kernel,
                               seq_len=seq_len, batch=batch, n_s=n_s)
    vmem = pl.BlockSpec(memory_space=pltpu.MemorySpace.VMEM)

    # Advisory cost estimate so XLA does not treat this serial,
    # latency-dominated call as free.
    flops = int(
        2 * seq_len * batch * n_s * 4 * n_s        # hoisted input projection
        + 2 * seq_len * batch * n_s * 4 * n_s      # recurrent projection
        + 2 * batch * (n_s + 32 + 64) * MLP_LANES)  # padded MLP head
    transcendentals = int(5 * seq_len * batch * n_s)  # 1 gate tanh + tanh(c)
    bytes_accessed = int(4 * (x2d.size + lstm_w.size + mlp_w.size
                              + batch * MLP_LANES))

    out = pl.pallas_call(
        kernel,
        out_shape=jax.ShapeDtypeStruct((batch, MLP_LANES), jnp.float32),
        in_specs=[vmem, vmem, vmem],
        out_specs=vmem,
        cost_estimate=pl.CostEstimate(flops=flops,
                                      transcendentals=transcendentals,
                                      bytes_accessed=bytes_accessed),
    )(x2d, lstm_w, mlp_w)
    return out[:, :1]


def init_params(key, n_s):
    """Deterministic init mirroring PyTorch default shapes (uniform +-1/sqrt(fan))."""
    ks = jax.random.split(key, 10)
    k_lstm = 1.0 / math.sqrt(n_s)

    def u(k, shape, bound):
        return jax.random.uniform(k, shape, jnp.float32, -bound, bound)

    # PyTorch stores weight_ih_l0: (4*n_s, n_s); we keep it transposed.
    w_ih_t = u(ks[0], (n_s, 4 * n_s), k_lstm)
    w_hh_t = u(ks[1], (n_s, 4 * n_s), k_lstm)
    b_ih = u(ks[2], (1, 4 * n_s), k_lstm)
    b_hh = u(ks[3], (1, 4 * n_s), k_lstm)

    w1_t = u(ks[4], (n_s, 32), 1.0 / math.sqrt(n_s))
    b1 = u(ks[5], (1, 32), 1.0 / math.sqrt(n_s))
    w2_t = u(ks[6], (32, 64), 1.0 / math.sqrt(32))
    b2 = u(ks[7], (1, 64), 1.0 / math.sqrt(32))
    w3_t = u(ks[8], (64, 1), 1.0 / math.sqrt(64))
    b3 = u(ks[9], (1, 1), 1.0 / math.sqrt(64))

    return dict(w_ih_t=w_ih_t, w_hh_t=w_hh_t, b_lstm=b_ih + b_hh,
                w1_t=w1_t, b1=b1, w2_t=w2_t, b2=b2, w3_t=w3_t, b3=b3)


def critic_reference(x, p):
    """Pure-JAX reference of the same forward pass (for a correctness check)."""
    seq_len, batch, n_s = x.shape
    h = jnp.zeros((batch, n_s), jnp.float32)
    c = jnp.zeros((batch, n_s), jnp.float32)
    for t in range(seq_len):
        gates = x[t] @ p["w_ih_t"] + h @ p["w_hh_t"] + p["b_lstm"]
        i = jax.nn.sigmoid(gates[:, 0 * n_s:1 * n_s])
        f = jax.nn.sigmoid(gates[:, 1 * n_s:2 * n_s])
        g = jnp.tanh(gates[:, 2 * n_s:3 * n_s])
        o = jax.nn.sigmoid(gates[:, 3 * n_s:4 * n_s])
        c = f * c + i * g
        h = o * jnp.tanh(c)
    z1 = jax.nn.relu(h @ p["w1_t"] + p["b1"])
    z2 = jax.nn.relu(z1 @ p["w2_t"] + p["b2"])
    return z2 @ p["w3_t"] + p["b3"]


if __name__ == "__main__":
    n_s = 32      # state size
    seq_len = 8
    batch = 2

    key = jax.random.PRNGKey(0)
    k_x, k_p = jax.random.split(key)
    x = jax.random.normal(k_x, (seq_len, batch, n_s), jnp.float32)
    params = init_params(k_p, n_s)

    # Weights are packed ONCE (offline relative to the forward pass).
    lstm_w, mlp_w = pack_params(params, n_s)

    value = critic_forward(x, lstm_w, mlp_w)
    value = jax.block_until_ready(value)

    ref = critic_reference(x, params)
    assert value.shape == (batch, 1)
    assert jnp.allclose(value, ref, atol=1e-4, rtol=1e-4), (value, ref)

    print("KERNEL_OK")
</pallas_src>

<mosaic_0001>
module attributes {stable_mosaic.version = 11 : i64} {
  func.func @critic_kernel(%arg0: memref<16x32xf32, #tpu.memory_space<vmem>>, %arg1: memref<72x128xf32, #tpu.memory_space<vmem>>, %arg2: memref<152x128xf32, #tpu.memory_space<vmem>>, %arg3: memref<2x128xf32, #tpu.memory_space<vmem>>) attributes {dimension_semantics = [], scalar_prefetch = 0 : i64, scratch_operands = 0 : i64, tpu.core_type = #tpu.core_type<tc>} {
    %c0 = arith.constant 0 : index
    %c0_0 = arith.constant 0 : index
    %0 = vector.load %arg1[%c0, %c0_0] : memref<72x128xf32, #tpu.memory_space<vmem>>, vector<32x128xf32>
    %c32 = arith.constant 32 : index
    %c0_1 = arith.constant 0 : index
    %1 = vector.load %arg1[%c32, %c0_1] : memref<72x128xf32, #tpu.memory_space<vmem>>, vector<32x128xf32>
    %c64 = arith.constant 64 : index
    %c0_2 = arith.constant 0 : index
    %2 = vector.load %arg1[%c64, %c0_2] : memref<72x128xf32, #tpu.memory_space<vmem>>, vector<1x128xf32>
    %c0_3 = arith.constant 0 : index
    %c0_4 = arith.constant 0 : index
    %3 = vector.load %arg0[%c0_3, %c0_4] : memref<16x32xf32, #tpu.memory_space<vmem>>, vector<16x32xf32>
    %cst = arith.constant dense<0.000000e+00> : vector<16x128xf32>
    %4 = tpu.matmul %3, %0, %cst {dimension_numbers = #tpu.dot_dimension_numbers<[1], [0], [0], [1], [0, 0, 1, 1], [], []>} : vector<16x32xf32>, vector<32x128xf32>, vector<16x128xf32> -> vector<16x128xf32>
    %5 = vector.broadcast %2 : vector<1x128xf32> to vector<16x128xf32>
    %6 = arith.addf %4, %5 : vector<16x128xf32>
    %7 = tpu.iota {dimensions = array<i32: 1>} : vector<2x128xi32>
    %c64_i32 = arith.constant 64 : i32
    %8 = vector.broadcast %c64_i32 : i32 to vector<2x128xi32>
    %9 = arith.cmpi sge, %7, %8 : vector<2x128xi32>
    %c96_i32 = arith.constant 96 : i32
    %10 = vector.broadcast %c96_i32 : i32 to vector<2x128xi32>
    %11 = arith.cmpi slt, %7, %10 : vector<2x128xi32>
    %12 = arith.andi %9, %11 : vector<2x128xi1>
    %cst_5 = arith.constant 0.000000e+00 : f32
    %13 = vector.broadcast %cst_5 : f32 to vector<2x32xf32>
    %cst_6 = arith.constant 0.000000e+00 : f32
    %14 = vector.broadcast %cst_6 : f32 to vector<2x32xf32>
    %15 = vector.extract_strided_slice %6 {offsets = [0, 0], sizes = [2, 128], strides = [1, 1]} : vector<16x128xf32> to vector<2x128xf32>
    %cst_7 = arith.constant dense<0.000000e+00> : vector<2x128xf32>
    %16 = tpu.matmul %13, %1, %cst_7 {dimension_numbers = #tpu.dot_dimension_numbers<[1], [0], [0], [1], [0, 0, 1, 1], [], []>} : vector<2x32xf32>, vector<32x128xf32>, vector<2x128xf32> -> vector<2x128xf32>
    %17 = arith.addf %15, %16 : vector<2x128xf32>
    %cst_8 = arith.constant 5.000000e-01 : f32
    %18 = vector.broadcast %cst_8 : f32 to vector<2x128xf32>
    %19 = arith.mulf %18, %17 : vector<2x128xf32>
    %20 = arith.select %12, %17, %19 : vector<2x128xi1>, vector<2x128xf32>
    %21 = math.tanh %20 : vector<2x128xf32>
    %cst_9 = arith.constant 5.000000e-01 : f32
    %22 = vector.broadcast %cst_9 : f32 to vector<2x128xf32>
    %23 = arith.mulf %22, %21 : vector<2x128xf32>
    %cst_10 = arith.constant 5.000000e-01 : f32
    %24 = vector.broadcast %cst_10 : f32 to vector<2x128xf32>
    %25 = arith.addf %23, %24 : vector<2x128xf32>
    %26 = arith.select %12, %21, %25 : vector<2x128xi1>, vector<2x128xf32>
    %27 = vector.extract_strided_slice %26 {offsets = [0, 0], sizes = [2, 32], strides = [1, 1]} : vector<2x128xf32> to vector<2x32xf32>
    %28 = vector.extract_strided_slice %26 {offsets = [0, 32], sizes = [2, 32], strides = [1, 1]} : vector<2x128xf32> to vector<2x32xf32>
    %29 = vector.extract_strided_slice %26 {offsets = [0, 64], sizes = [2, 32], strides = [1, 1]} : vector<2x128xf32> to vector<2x32xf32>
    %30 = vector.extract_strided_slice %26 {offsets = [0, 96], sizes = [2, 32], strides = [1, 1]} : vector<2x128xf32> to vector<2x32xf32>
    %31 = arith.mulf %28, %14 : vector<2x32xf32>
    %32 = arith.mulf %27, %29 : vector<2x32xf32>
    %33 = arith.addf %31, %32 : vector<2x32xf32>
    %34 = math.tanh %33 : vector<2x32xf32>
    %35 = arith.mulf %30, %34 : vector<2x32xf32>
    %36 = vector.extract_strided_slice %6 {offsets = [2, 0], sizes = [2, 128], strides = [1, 1]} : vector<16x128xf32> to vector<2x128xf32>
    %cst_11 = arith.constant dense<0.000000e+00> : vector<2x128xf32>
    %37 = tpu.matmul %35, %1, %cst_11 {dimension_numbers = #tpu.dot_dimension_numbers<[1], [0], [0], [1], [0, 0, 1, 1], [], []>} : vector<2x32xf32>, vector<32x128xf32>, vector<2x128xf32> -> vector<2x128xf32>
    %38 = arith.addf %36, %37 : vector<2x128xf32>
    %cst_12 = arith.constant 5.000000e-01 : f32
    %39 = vector.broadcast %cst_12 : f32 to vector<2x128xf32>
    %40 = arith.mulf %39, %38 : vector<2x128xf32>
    %41 = arith.select %12, %38, %40 : vector<2x128xi1>, vector<2x128xf32>
    %42 = math.tanh %41 : vector<2x128xf32>
    %cst_13 = arith.constant 5.000000e-01 : f32
    %43 = vector.broadcast %cst_13 : f32 to vector<2x128xf32>
    %44 = arith.mulf %43, %42 : vector<2x128xf32>
    %cst_14 = arith.constant 5.000000e-01 : f32
    %45 = vector.broadcast %cst_14 : f32 to vector<2x128xf32>
    %46 = arith.addf %44, %45 : vector<2x128xf32>
    %47 = arith.select %12, %42, %46 : vector<2x128xi1>, vector<2x128xf32>
    %48 = vector.extract_strided_slice %47 {offsets = [0, 0], sizes = [2, 32], strides = [1, 1]} : vector<2x128xf32> to vector<2x32xf32>
    %49 = vector.extract_strided_slice %47 {offsets = [0, 32], sizes = [2, 32], strides = [1, 1]} : vector<2x128xf32> to vector<2x32xf32>
    %50 = vector.extract_strided_slice %47 {offsets = [0, 64], sizes = [2, 32], strides = [1, 1]} : vector<2x128xf32> to vector<2x32xf32>
    %51 = vector.extract_strided_slice %47 {offsets = [0, 96], sizes = [2, 32], strides = [1, 1]} : vector<2x128xf32> to vector<2x32xf32>
    %52 = arith.mulf %49, %33 : vector<2x32xf32>
    %53 = arith.mulf %48, %50 : vector<2x32xf32>
    %54 = arith.addf %52, %53 : vector<2x32xf32>
    %55 = math.tanh %54 : vector<2x32xf32>
    %56 = arith.mulf %51, %55 : vector<2x32xf32>
    %57 = vector.extract_strided_slice %6 {offsets = [4, 0], sizes = [2, 128], strides = [1, 1]} : vector<16x128xf32> to vector<2x128xf32>
    %cst_15 = arith.constant dense<0.000000e+00> : vector<2x128xf32>
    %58 = tpu.matmul %56, %1, %cst_15 {dimension_numbers = #tpu.dot_dimension_numbers<[1], [0], [0], [1], [0, 0, 1, 1], [], []>} : vector<2x32xf32>, vector<32x128xf32>, vector<2x128xf32> -> vector<2x128xf32>
    %59 = arith.addf %57, %58 : vector<2x128xf32>
    %cst_16 = arith.constant 5.000000e-01 : f32
    %60 = vector.broadcast %cst_16 : f32 to vector<2x128xf32>
    %61 = arith.mulf %60, %59 : vector<2x128xf32>
    %62 = arith.select %12, %59, %61 : vector<2x128xi1>, vector<2x128xf32>
    %63 = math.tanh %62 : vector<2x128xf32>
    %cst_17 = arith.constant 5.000000e-01 : f32
    %64 = vector.broadcast %cst_17 : f32 to vector<2x128xf32>
    %65 = arith.mulf %64, %63 : vector<2x128xf32>
    %cst_18 = arith.constant 5.000000e-01 : f32
    %66 = vector.broadcast %cst_18 : f32 to vector<2x128xf32>
    %67 = arith.addf %65, %66 : vector<2x128xf32>
    %68 = arith.select %12, %63, %67 : vector<2x128xi1>, vector<2x128xf32>
    %69 = vector.extract_strided_slice %68 {offsets = [0, 0], sizes = [2, 32], strides = [1, 1]} : vector<2x128xf32> to vector<2x32xf32>
    %70 = vector.extract_strided_slice %68 {offsets = [0, 32], sizes = [2, 32], strides = [1, 1]} : vector<2x128xf32> to vector<2x32xf32>
    %71 = vector.extract_strided_slice %68 {offsets = [0, 64], sizes = [2, 32], strides = [1, 1]} : vector<2x128xf32> to vector<2x32xf32>
    %72 = vector.extract_strided_slice %68 {offsets = [0, 96], sizes = [2, 32], strides = [1, 1]} : vector<2x128xf32> to vector<2x32xf32>
    %73 = arith.mulf %70, %54 : vector<2x32xf32>
    %74 = arith.mulf %69, %71 : vector<2x32xf32>
    %75 = arith.addf %73, %74 : vector<2x32xf32>
    %76 = math.tanh %75 : vector<2x32xf32>
    %77 = arith.mulf %72, %76 : vector<2x32xf32>
    %78 = vector.extract_strided_slice %6 {offsets = [6, 0], sizes = [2, 128], strides = [1, 1]} : vector<16x128xf32> to vector<2x128xf32>
    %cst_19 = arith.constant dense<0.000000e+00> : vector<2x128xf32>
    %79 = tpu.matmul %77, %1, %cst_19 {dimension_numbers = #tpu.dot_dimension_numbers<[1], [0], [0], [1], [0, 0, 1, 1], [], []>} : vector<2x32xf32>, vector<32x128xf32>, vector<2x128xf32> -> vector<2x128xf32>
    %80 = arith.addf %78, %79 : vector<2x128xf32>
    %cst_20 = arith.constant 5.000000e-01 : f32
    %81 = vector.broadcast %cst_20 : f32 to vector<2x128xf32>
    %82 = arith.mulf %81, %80 : vector<2x128xf32>
    %83 = arith.select %12, %80, %82 : vector<2x128xi1>, vector<2x128xf32>
    %84 = math.tanh %83 : vector<2x128xf32>
    %cst_21 = arith.constant 5.000000e-01 : f32
    %85 = vector.broadcast %cst_21 : f32 to vector<2x128xf32>
    %86 = arith.mulf %85, %84 : vector<2x128xf32>
    %cst_22 = arith.constant 5.000000e-01 : f32
    %87 = vector.broadcast %cst_22 : f32 to vector<2x128xf32>
    %88 = arith.addf %86, %87 : vector<2x128xf32>
    %89 = arith.select %12, %84, %88 : vector<2x128xi1>, vector<2x128xf32>
    %90 = vector.extract_strided_slice %89 {offsets = [0, 0], sizes = [2, 32], strides = [1, 1]} : vector<2x128xf32> to vector<2x32xf32>
    %91 = vector.extract_strided_slice %89 {offsets = [0, 32], sizes = [2, 32], strides = [1, 1]} : vector<2x128xf32> to vector<2x32xf32>
    %92 = vector.extract_strided_slice %89 {offsets = [0, 64], sizes = [2, 32], strides = [1, 1]} : vector<2x128xf32> to vector<2x32xf32>
    %93 = vector.extract_strided_slice %89 {offsets = [0, 96], sizes = [2, 32], strides = [1, 1]} : vector<2x128xf32> to vector<2x32xf32>
    %94 = arith.mulf %91, %75 : vector<2x32xf32>
    %95 = arith.mulf %90, %92 : vector<2x32xf32>
    %96 = arith.addf %94, %95 : vector<2x32xf32>
    %97 = math.tanh %96 : vector<2x32xf32>
    %98 = arith.mulf %93, %97 : vector<2x32xf32>
    %99 = vector.extract_strided_slice %6 {offsets = [8, 0], sizes = [2, 128], strides = [1, 1]} : vector<16x128xf32> to vector<2x128xf32>
    %cst_23 = arith.constant dense<0.000000e+00> : vector<2x128xf32>
    %100 = tpu.matmul %98, %1, %cst_23 {dimension_numbers = #tpu.dot_dimension_numbers<[1], [0], [0], [1], [0, 0, 1, 1], [], []>} : vector<2x32xf32>, vector<32x128xf32>, vector<2x128xf32> -> vector<2x128xf32>
    %101 = arith.addf %99, %100 : vector<2x128xf32>
    %cst_24 = arith.constant 5.000000e-01 : f32
    %102 = vector.broadcast %cst_24 : f32 to vector<2x128xf32>
    %103 = arith.mulf %102, %101 : vector<2x128xf32>
    %104 = arith.select %12, %101, %103 : vector<2x128xi1>, vector<2x128xf32>
    %105 = math.tanh %104 : vector<2x128xf32>
    %cst_25 = arith.constant 5.000000e-01 : f32
    %106 = vector.broadcast %cst_25 : f32 to vector<2x128xf32>
    %107 = arith.mulf %106, %105 : vector<2x128xf32>
    %cst_26 = arith.constant 5.000000e-01 : f32
    %108 = vector.broadcast %cst_26 : f32 to vector<2x128xf32>
    %109 = arith.addf %107, %108 : vector<2x128xf32>
    %110 = arith.select %12, %105, %109 : vector<2x128xi1>, vector<2x128xf32>
    %111 = vector.extract_strided_slice %110 {offsets = [0, 0], sizes = [2, 32], strides = [1, 1]} : vector<2x128xf32> to vector<2x32xf32>
    %112 = vector.extract_strided_slice %110 {offsets = [0, 32], sizes = [2, 32], strides = [1, 1]} : vector<2x128xf32> to vector<2x32xf32>
    %113 = vector.extract_strided_slice %110 {offsets = [0, 64], sizes = [2, 32], strides = [1, 1]} : vector<2x128xf32> to vector<2x32xf32>
    %114 = vector.extract_strided_slice %110 {offsets = [0, 96], sizes = [2, 32], strides = [1, 1]} : vector<2x128xf32> to vector<2x32xf32>
    %115 = arith.mulf %112, %96 : vector<2x32xf32>
    %116 = arith.mulf %111, %113 : vector<2x32xf32>
    %117 = arith.addf %115, %116 : vector<2x32xf32>
    %118 = math.tanh %117 : vector<2x32xf32>
    %119 = arith.mulf %114, %118 : vector<2x32xf32>
    %120 = vector.extract_strided_slice %6 {offsets = [10, 0], sizes = [2, 128], strides = [1, 1]} : vector<16x128xf32> to vector<2x128xf32>
    %cst_27 = arith.constant dense<0.000000e+00> : vector<2x128xf32>
    %121 = tpu.matmul %119, %1, %cst_27 {dimension_numbers = #tpu.dot_dimension_numbers<[1], [0], [0], [1], [0, 0, 1, 1], [], []>} : vector<2x32xf32>, vector<32x128xf32>, vector<2x128xf32> -> vector<2x128xf32>
    %122 = arith.addf %120, %121 : vector<2x128xf32>
    %cst_28 = arith.constant 5.000000e-01 : f32
    %123 = vector.broadcast %cst_28 : f32 to vector<2x128xf32>
    %124 = arith.mulf %123, %122 : vector<2x128xf32>
    %125 = arith.select %12, %122, %124 : vector<2x128xi1>, vector<2x128xf32>
    %126 = math.tanh %125 : vector<2x128xf32>
    %cst_29 = arith.constant 5.000000e-01 : f32
    %127 = vector.broadcast %cst_29 : f32 to vector<2x128xf32>
    %128 = arith.mulf %127, %126 : vector<2x128xf32>
    %cst_30 = arith.constant 5.000000e-01 : f32
    %129 = vector.broadcast %cst_30 : f32 to vector<2x128xf32>
    %130 = arith.addf %128, %129 : vector<2x128xf32>
    %131 = arith.select %12, %126, %130 : vector<2x128xi1>, vector<2x128xf32>
    %132 = vector.extract_strided_slice %131 {offsets = [0, 0], sizes = [2, 32], strides = [1, 1]} : vector<2x128xf32> to vector<2x32xf32>
    %133 = vector.extract_strided_slice %131 {offsets = [0, 32], sizes = [2, 32], strides = [1, 1]} : vector<2x128xf32> to vector<2x32xf32>
    %134 = vector.extract_strided_slice %131 {offsets = [0, 64], sizes = [2, 32], strides = [1, 1]} : vector<2x128xf32> to vector<2x32xf32>
    %135 = vector.extract_strided_slice %131 {offsets = [0, 96], sizes = [2, 32], strides = [1, 1]} : vector<2x128xf32> to vector<2x32xf32>
    %136 = arith.mulf %133, %117 : vector<2x32xf32>
    %137 = arith.mulf %132, %134 : vector<2x32xf32>
    %138 = arith.addf %136, %137 : vector<2x32xf32>
    %139 = math.tanh %138 : vector<2x32xf32>
    %140 = arith.mulf %135, %139 : vector<2x32xf32>
    %141 = vector.extract_strided_slice %6 {offsets = [12, 0], sizes = [2, 128], strides = [1, 1]} : vector<16x128xf32> to vector<2x128xf32>
    %cst_31 = arith.constant dense<0.000000e+00> : vector<2x128xf32>
    %142 = tpu.matmul %140, %1, %cst_31 {dimension_numbers = #tpu.dot_dimension_numbers<[1], [0], [0], [1], [0, 0, 1, 1], [], []>} : vector<2x32xf32>, vector<32x128xf32>, vector<2x128xf32> -> vector<2x128xf32>
    %143 = arith.addf %141, %142 : vector<2x128xf32>
    %cst_32 = arith.constant 5.000000e-01 : f32
    %144 = vector.broadcast %cst_32 : f32 to vector<2x128xf32>
    %145 = arith.mulf %144, %143 : vector<2x128xf32>
    %146 = arith.select %12, %143, %145 : vector<2x128xi1>, vector<2x128xf32>
    %147 = math.tanh %146 : vector<2x128xf32>
    %cst_33 = arith.constant 5.000000e-01 : f32
    %148 = vector.broadcast %cst_33 : f32 to vector<2x128xf32>
    %149 = arith.mulf %148, %147 : vector<2x128xf32>
    %cst_34 = arith.constant 5.000000e-01 : f32
    %150 = vector.broadcast %cst_34 : f32 to vector<2x128xf32>
    %151 = arith.addf %149, %150 : vector<2x128xf32>
    %152 = arith.select %12, %147, %151 : vector<2x128xi1>, vector<2x128xf32>
    %153 = vector.extract_strided_slice %152 {offsets = [0, 0], sizes = [2, 32], strides = [1, 1]} : vector<2x128xf32> to vector<2x32xf32>
    %154 = vector.extract_strided_slice %152 {offsets = [0, 32], sizes = [2, 32], strides = [1, 1]} : vector<2x128xf32> to vector<2x32xf32>
    %155 = vector.extract_strided_slice %152 {offsets = [0, 64], sizes = [2, 32], strides = [1, 1]} : vector<2x128xf32> to vector<2x32xf32>
    %156 = vector.extract_strided_slice %152 {offsets = [0, 96], sizes = [2, 32], strides = [1, 1]} : vector<2x128xf32> to vector<2x32xf32>
    %157 = arith.mulf %154, %138 : vector<2x32xf32>
    %158 = arith.mulf %153, %155 : vector<2x32xf32>
    %159 = arith.addf %157, %158 : vector<2x32xf32>
    %160 = math.tanh %159 : vector<2x32xf32>
    %161 = arith.mulf %156, %160 : vector<2x32xf32>
    %162 = vector.extract_strided_slice %6 {offsets = [14, 0], sizes = [2, 128], strides = [1, 1]} : vector<16x128xf32> to vector<2x128xf32>
    %cst_35 = arith.constant dense<0.000000e+00> : vector<2x128xf32>
    %163 = tpu.matmul %161, %1, %cst_35 {dimension_numbers = #tpu.dot_dimension_numbers<[1], [0], [0], [1], [0, 0, 1, 1], [], []>} : vector<2x32xf32>, vector<32x128xf32>, vector<2x128xf32> -> vector<2x128xf32>
    %164 = arith.addf %162, %163 : vector<2x128xf32>
    %cst_36 = arith.constant 5.000000e-01 : f32
    %165 = vector.broadcast %cst_36 : f32 to vector<2x128xf32>
    %166 = arith.mulf %165, %164 : vector<2x128xf32>
    %167 = arith.select %12, %164, %166 : vector<2x128xi1>, vector<2x128xf32>
    %168 = math.tanh %167 : vector<2x128xf32>
    %cst_37 = arith.constant 5.000000e-01 : f32
    %169 = vector.broadcast %cst_37 : f32 to vector<2x128xf32>
    %170 = arith.mulf %169, %168 : vector<2x128xf32>
    %cst_38 = arith.constant 5.000000e-01 : f32
    %171 = vector.broadcast %cst_38 : f32 to vector<2x128xf32>
    %172 = arith.addf %170, %171 : vector<2x128xf32>
    %173 = arith.select %12, %168, %172 : vector<2x128xi1>, vector<2x128xf32>
    %174 = vector.extract_strided_slice %173 {offsets = [0, 0], sizes = [2, 32], strides = [1, 1]} : vector<2x128xf32> to vector<2x32xf32>
    %175 = vector.extract_strided_slice %173 {offsets = [0, 32], sizes = [2, 32], strides = [1, 1]} : vector<2x128xf32> to vector<2x32xf32>
    %176 = vector.extract_strided_slice %173 {offsets = [0, 64], sizes = [2, 32], strides = [1, 1]} : vector<2x128xf32> to vector<2x32xf32>
    %177 = vector.extract_strided_slice %173 {offsets = [0, 96], sizes = [2, 32], strides = [1, 1]} : vector<2x128xf32> to vector<2x32xf32>
    %178 = arith.mulf %175, %159 : vector<2x32xf32>
    %179 = arith.mulf %174, %176 : vector<2x32xf32>
    %180 = arith.addf %178, %179 : vector<2x32xf32>
    %181 = math.tanh %180 : vector<2x32xf32>
    %182 = arith.mulf %177, %181 : vector<2x32xf32>
    %c0_39 = arith.constant 0 : index
    %c0_40 = arith.constant 0 : index
    %183 = vector.load %arg2[%c0_39, %c0_40] : memref<152x128xf32, #tpu.memory_space<vmem>>, vector<32x128xf32>
    %c32_41 = arith.constant 32 : index
    %c0_42 = arith.constant 0 : index
    %184 = vector.load %arg2[%c32_41, %c0_42] : memref<152x128xf32, #tpu.memory_space<vmem>>, vector<1x128xf32>
    %cst_43 = arith.constant dense<0.000000e+00> : vector<2x128xf32>
    %185 = tpu.matmul %182, %183, %cst_43 {dimension_numbers = #tpu.dot_dimension_numbers<[1], [0], [0], [1], [0, 0, 1, 1], [], []>} : vector<2x32xf32>, vector<32x128xf32>, vector<2x128xf32> -> vector<2x128xf32>
    %186 = vector.broadcast %184 : vector<1x128xf32> to vector<2x128xf32>
    %187 = arith.addf %185, %186 : vector<2x128xf32>
    %cst_44 = arith.constant 0.000000e+00 : f32
    %188 = vector.broadcast %cst_44 : f32 to vector<2x128xf32>
    %189 = arith.maximumf %187, %188 : vector<2x128xf32>
    %c40 = arith.constant 40 : index
    %c0_45 = arith.constant 0 : index
    %190 = vector.load %arg2[%c40, %c0_45] : memref<152x128xf32, #tpu.memory_space<vmem>>, vector<32x128xf32>
    %c72 = arith.constant 72 : index
    %c0_46 = arith.constant 0 : index
    %191 = vector.load %arg2[%c72, %c0_46] : memref<152x128xf32, #tpu.memory_space<vmem>>, vector<1x128xf32>
    %192 = vector.extract_strided_slice %189 {offsets = [0, 0], sizes = [2, 32], strides = [1, 1]} : vector<2x128xf32> to vector<2x32xf32>
    %cst_47 = arith.constant dense<0.000000e+00> : vector<2x128xf32>
    %193 = tpu.matmul %192, %190, %cst_47 {dimension_numbers = #tpu.dot_dimension_numbers<[1], [0], [0], [1], [0, 0, 1, 1], [], []>} : vector<2x32xf32>, vector<32x128xf32>, vector<2x128xf32> -> vector<2x128xf32>
    %194 = vector.broadcast %191 : vector<1x128xf32> to vector<2x128xf32>
    %195 = arith.addf %193, %194 : vector<2x128xf32>
    %cst_48 = arith.constant 0.000000e+00 : f32
    %196 = vector.broadcast %cst_48 : f32 to vector<2x128xf32>
    %197 = arith.maximumf %195, %196 : vector<2x128xf32>
    %c80 = arith.constant 80 : index
    %c0_49 = arith.constant 0 : index
    %198 = vector.load %arg2[%c80, %c0_49] : memref<152x128xf32, #tpu.memory_space<vmem>>, vector<64x128xf32>
    %c144 = arith.constant 144 : index
    %c0_50 = arith.constant 0 : index
    %199 = vector.load %arg2[%c144, %c0_50] : memref<152x128xf32, #tpu.memory_space<vmem>>, vector<1x128xf32>
    %200 = vector.extract_strided_slice %197 {offsets = [0, 0], sizes = [2, 64], strides = [1, 1]} : vector<2x128xf32> to vector<2x64xf32>
    %cst_51 = arith.constant dense<0.000000e+00> : vector<2x128xf32>
    %201 = tpu.matmul %200, %198, %cst_51 {dimension_numbers = #tpu.dot_dimension_numbers<[1], [0], [0], [1], [0, 0, 1, 1], [], []>} : vector<2x64xf32>, vector<64x128xf32>, vector<2x128xf32> -> vector<2x128xf32>
    %202 = vector.broadcast %199 : vector<1x128xf32> to vector<2x128xf32>
    %203 = arith.addf %201, %202 : vector<2x128xf32>
    %c0_52 = arith.constant 0 : index
    %c0_53 = arith.constant 0 : index
    %204 = vector.load %arg3[%c0_52, %c0_53] : memref<2x128xf32, #tpu.memory_space<vmem>>, vector<2x128xf32>
    tpu.vector_store %arg3[%c0_52, %c0_53], %203 {strides = array<i32>} : memref<2x128xf32, #tpu.memory_space<vmem>>, vector<2x128xf32>,
    return
  }
}

</mosaic_0001>

<llo_original>
// kernel: tpu_custom_call.1
$region0: #{tpu_custom_call.1}
  #allocation0 [shape = 'u32[]', space=smem, size = 0x4, offset = 0x4, fixed_abs, tag = 'smem constant byte address 0x4 - core index']
  #allocation1 [shape = 'u32[144,128]{1,0:T(1,128)}', space=vmem, size = 0x12000, scoped, tag = 'internal scratch']
  %s0 = inlined_call_operand.hbm [shape: f32[16,32], index: 0, kind: input, shape index: {}]
  %s1 = inlined_call_operand.hbm [shape: f32[72,128], index: 1, kind: input, shape index: {}]
  %s2 = inlined_call_operand.hbm [shape: f32[152,128], index: 2, kind: input, shape index: {}]
  %s3 = inlined_call_operand.hbm [shape: f32[2,128], index: 3, kind: output, shape index: {}]
  %s4 = sld [smem:[#allocation0]]
  $region34: #{tpu_custom_call.1} parent=0
    _
  %s6 = ssub.s32 1, %s4
  %s7 = scalar_select 0, %s6, %s4
  $region1: #{tpu_custom_call.1} parent=0
    #allocation2 [shape = 'u8[8192]{0}', space=vmem, size = 0x2000, scoped, tag = 'input window, operand 0, single buffered']
    #allocation3 [shape = 's32[1]{0}', space=sflag, size = 0x4, scoped, tag = 'scoped memory for tpu_custom_call.1']
    #allocation4 [shape = 's32[1]{0}', space=sflag, size = 0x4, scoped, tag = 'scoped memory for tpu_custom_call.1']
    #allocation5 [shape = 'u8[36864]{0}', space=vmem, size = 0x9000, scoped, tag = 'input window, operand 1, single buffered']
    #allocation6 [shape = 's32[1]{0}', space=sflag, size = 0x4, scoped, tag = 'scoped memory for tpu_custom_call.1']
    #allocation7 [shape = 'u8[77824]{0}', space=vmem, size = 0x13000, scoped, tag = 'input window, operand 2, single buffered']
    #allocation8 [shape = 'u8[1024]{0}', space=vmem, size = 0x400, scoped, tag = 'output window, operand 0, single buffered']
    %8 = vsyncpa [#allocation3], 0
    %9 = vsyncpa [#allocation6], 0
    %10 = vsyncpa [#allocation4], 0
    // Predicated region
    $region2: #{tpu_custom_call.1} parent=1 // pred_check
      _
    $region3: #{tpu_custom_call.1} parent=1 // pred_check_branch
      %12 = sbr.rel (0) target = $region5
    $region4: #{tpu_custom_call.1} parent=1 // pred_region
      %s14 = ssub.s32 256, 256
      %15 = vsyncadd [#allocation3], %s14
      %s16 = sshll.u32 [#allocation2], 4
      %s17 = int_to_ptr.vmem [resolvable:$true] %s16
      %22 = dma.hbm_to_vmem [thread:$0]  %s0, 256, %s17, [#allocation3], 128, 128, 8
    $region5: #{tpu_custom_call.1} parent=1 // pred_fallthru
      _
    // Predicated region
    $region6: #{tpu_custom_call.1} parent=1 // pred_check
      _
    $region7: #{tpu_custom_call.1} parent=1 // pred_check_branch
      %24 = sbr.rel (0) target = $region9
    $region8: #{tpu_custom_call.1} parent=1 // pred_region
      %s26 = ssub.s32 1152, 1152
      %27 = vsyncadd [#allocation6], %s26
      %s28 = sshll.u32 [#allocation5], 4
      %s29 = int_to_ptr.vmem [resolvable:$true] %s28
      %34 = dma.hbm_to_vmem [thread:$0]  %s1, 1152, %s29, [#allocation6], 128, 128, 8
    $region9: #{tpu_custom_call.1} parent=1 // pred_fallthru
      _
    // Predicated region
    $region10: #{tpu_custom_call.1} parent=1 // pred_check
      _
    $region11: #{tpu_custom_call.1} parent=1 // pred_check_branch
      %36 = sbr.rel (0) target = $region13
    $region12: #{tpu_custom_call.1} parent=1 // pred_region
      %s38 = ssub.s32 2432, 2432
      %39 = vsyncadd [#allocation6], %s38
      %s40 = sshll.u32 [#allocation7], 4
      %s41 = int_to_ptr.vmem [resolvable:$true] %s40
      %46 = dma.hbm_to_vmem [thread:$0]  %s2, 2432, %s41, [#allocation6], 128, 128, 8
    $region13: #{tpu_custom_call.1} parent=1 // pred_fallthru
      _
    // Predicated region
    $region14: #{tpu_custom_call.1} parent=1 // pred_check
      _
    $region15: #{tpu_custom_call.1} parent=1 // pred_check_branch
      %48 = sbr.rel (0) target = $region17
    $region16: #{tpu_custom_call.1} parent=1 // pred_region
      %49 = dma.done [#allocation3], 256
    $region17: #{tpu_custom_call.1} parent=1 // pred_fallthru
      _
    // Predicated region
    $region18: #{tpu_custom_call.1} parent=1 // pred_check
      _
    $region19: #{tpu_custom_call.1} parent=1 // pred_check_branch
      %51 = sbr.rel (0) target = $region21
    $region20: #{tpu_custom_call.1} parent=1 // pred_region
      %52 = dma.done [#allocation6], 1152
    $region21: #{tpu_custom_call.1} parent=1 // pred_fallthru
      _
    // Predicated region
    $region22: #{tpu_custom_call.1} parent=1 // pred_check
      _
    $region23: #{tpu_custom_call.1} parent=1 // pred_check_branch
      %54 = sbr.rel (0) target = $region25
    $region24: #{tpu_custom_call.1} parent=1 // pred_region
      %55 = dma.done [#allocation6], 2432
    $region25: #{tpu_custom_call.1} parent=1 // pred_fallthru
      _
    %v56 = vld [vmem:[#allocation5] sm:$0xff]
    %v57 = vld [vmem:[#allocation5 + $0x8] sm:$0xff]
    %v58 = vld [vmem:[#allocation5 + $0x10] sm:$0xff]
    %v59 = vld [vmem:[#allocation5 + $0x18] sm:$0xff]
    %v60 = vld [vmem:[#allocation5 + $0x20] sm:$0xff]
    %v61 = vld [vmem:[#allocation5 + $0x28] sm:$0xff]
    %v62 = vld [vmem:[#allocation5 + $0x30] sm:$0xff]
    %v63 = vld [vmem:[#allocation5 + $0x38] sm:$0xff]
    %v64 = vld [vmem:[#allocation5 + $0x40] sm:$0x1]
    %v65 = vld [vmem:[#allocation2] sm:$0xff]
    %v66 = vld [vmem:[#allocation2 + $0x8] sm:$0xff]
    %v67 = vlaneseq
    %v68 = vshrl.u32 %v67, 7
    %v69 = vsub.s32 0, %v68
    %v70 = vrot.slane %v64, %v69
    %vm71 = vcmask 261120
    %v73 = vsel %vm71, %v65, 0
    %v76 = vsel %vm71, %v66, 0
    %78 = vmatprep.subr.mxu0 0.0
    %79 = vmatpush1.msra.mxu0 0.0
    %80 = vmatprep.subr.mxu0 0.0
    %81 = vmatpush1.msra.mxu0 0.0
    %82 = vmatprep.subr.mxu0 0.0
    %83 = vmatpush1.msra.mxu0 0.0
    %84 = vmatprep.subr.mxu0 0.0
    %85 = vmatpush1.msra.mxu0 0.0
    %86 = vmatprep.subr.mxu0 0.0
    %87 = vmatpush1.msra.mxu0 0.0
    %88 = vmatprep.subr.mxu0 0.0
    %89 = vmatpush1.msra.mxu0 0.0
    %90 = vmatprep.subr.mxu0 0.0
    %91 = vmatpush1.msra.mxu0 0.0
    %92 = vmatprep.subr.mxu0 0.0
    %93 = vmatpush1.msra.mxu0 0.0
    %94 = vmatprep.subr.mxu0 0.0
    %95 = vmatpush1.msra.mxu0 0.0
    %96 = vmatprep.subr.mxu0 0.0
    %97 = vmatpush1.msra.mxu0 0.0
    %98 = vmatprep.subr.mxu0 0.0
    %99 = vmatpush1.msra.mxu0 0.0
    %100 = vmatprep.subr.mxu0 0.0
    %101 = vmatpush1.msra.mxu0 0.0
    %102 = vmatprep.subr.mxu0 0.0
    %103 = vmatpush1.msra.mxu0 %v59
    %104 = vmatprep.subr.mxu0 0.0
    %105 = vmatpush1.msra.mxu0 %v58
    %106 = vmatprep.subr.mxu0 0.0
    %107 = vmatpush1.msra.mxu0 %v57
    %108 = vmatprep.subr.mxu0 0.0
    %109 = vmatpush1.msra.mxu0 %v56
    %110 = vmatprep.subr.mxu0 0.0
    %111 = vmatpush2.msra.mxu0 0.0
    %112 = vmatprep.subr.mxu0 0.0
    %113 = vmatpush2.msra.mxu0 0.0
    %114 = vmatprep.subr.mxu0 0.0
    %115 = vmatpush2.msra.mxu0 0.0
    %116 = vmatprep.subr.mxu0 0.0
    %117 = vmatpush2.msra.mxu0 0.0
    %118 = vmatprep.subr.mxu0 0.0
    %119 = vmatpush2.msra.mxu0 0.0
    %120 = vmatprep.subr.mxu0 0.0
    %121 = vmatpush2.msra.mxu0 0.0
    %122 = vmatprep.subr.mxu0 0.0
    %123 = vmatpush2.msra.mxu0 0.0
    %124 = vmatprep.subr.mxu0 0.0
    %125 = vmatpush2.msra.mxu0 0.0
    %126 = vmatprep.subr.mxu0 0.0
    %127 = vmatpush2.msra.mxu0 0.0
    %128 = vmatprep.subr.mxu0 0.0
    %129 = vmatpush2.msra.mxu0 0.0
    %130 = vmatprep.subr.mxu0 0.0
    %131 = vmatpush2.msra.mxu0 0.0
    %132 = vmatprep.subr.mxu0 0.0
    %133 = vmatpush2.msra.mxu0 0.0
    %134 = vmatprep.subr.mxu0 0.0
    %135 = vmatpush2.msra.mxu0 0.0
    %136 = vmatprep.subr.mxu0 0.0
    %137 = vmatpush2.msra.mxu0 0.0
    %138 = vmatprep.subr.mxu0 0.0
    %139 = vmatpush2.msra.mxu0 0.0
    %140 = vmatprep.subr.mxu0 0.0
    %141 = vmatpush2.msra.mxu0 0.0
    %142 = vmatprep.mubr.f32.mxu0 0.0
    %143 = vmatmul.mubr.f32.gmra.mxu0 %v73
    %v144 = vpop.f32.mrf.mxu0
    %v145 = vadd.f32 %v70, %v144
    %v146 = vpop.f32.mrf.mxu0
    %147 = vmatprep.mubr.f32.mxu0 0.0
    %148 = vmatmul.mubr.f32.gmra.mxu0 %v76
    %v149 = vpop.f32.mrf.mxu0
    %v150 = vadd.f32 %v70, %v149
    %v151 = vpop.f32.mrf.mxu0
    %152 = vdwg.mxu0
    %v153 = vlaneseq
    %v154 = vand.u32 %v153, 127
    %vm155 = vcmp.ge.s32.totalorder %v154, 64
    %vm156 = vcmp.lt.s32.totalorder %v154, 96
    %vm157 = vmand %vm155, %vm156
    %v159 = vsel %vm71, 0.0, 0
    %161 = vmatprep.subr.mxu0 0.0
    %162 = vmatpush1.msra.mxu0 0.0
    %163 = vmatprep.subr.mxu0 0.0
    %164 = vmatpush1.msra.mxu0 0.0
    %165 = vmatprep.subr.mxu0 0.0
    %166 = vmatpush1.msra.mxu0 0.0
    %167 = vmatprep.subr.mxu0 0.0
    %168 = vmatpush1.msra.mxu0 0.0
    %169 = vmatprep.subr.mxu0 0.0
    %170 = vmatpush1.msra.mxu0 0.0
    %171 = vmatprep.subr.mxu0 0.0
    %172 = vmatpush1.msra.mxu0 0.0
    %173 = vmatprep.subr.mxu0 0.0
    %174 = vmatpush1.msra.mxu0 0.0
    %175 = vmatprep.subr.mxu0 0.0
    %176 = vmatpush1.msra.mxu0 0.0
    %177 = vmatprep.subr.mxu0 0.0
    %178 = vmatpush1.msra.mxu0 0.0
    %179 = vmatprep.subr.mxu0 0.0
    %180 = vmatpush1.msra.mxu0 0.0
    %181 = vmatprep.subr.mxu0 0.0
    %182 = vmatpush1.msra.mxu0 0.0
    %183 = vmatprep.subr.mxu0 0.0
    %184 = vmatpush1.msra.mxu0 0.0
    %185 = vmatprep.subr.mxu0 0.0
    %186 = vmatpush1.msra.mxu0 %v63
    %187 = vmatprep.subr.mxu0 0.0
    %188 = vmatpush1.msra.mxu0 %v62
    %189 = vmatprep.subr.mxu0 0.0
    %190 = vmatpush1.msra.mxu0 %v61
    %191 = vmatprep.subr.mxu0 0.0
    %192 = vmatpush1.msra.mxu0 %v60
    %193 = vmatprep.subr.mxu0 0.0
    %194 = vmatpush2.msra.mxu0 0.0
    %195 = vmatprep.subr.mxu0 0.0
    %196 = vmatpush2.msra.mxu0 0.0
    %197 = vmatprep.subr.mxu0 0.0
    %198 = vmatpush2.msra.mxu0 0.0
    %199 = vmatprep.subr.mxu0 0.0
    %200 = vmatpush2.msra.mxu0 0.0
    %201 = vmatprep.subr.mxu0 0.0
    %202 = vmatpush2.msra.mxu0 0.0
    %203 = vmatprep.subr.mxu0 0.0
    %204 = vmatpush2.msra.mxu0 0.0
    %205 = vmatprep.subr.mxu0 0.0
    %206 = vmatpush2.msra.mxu0 0.0
    %207 = vmatprep.subr.mxu0 0.0
    %208 = vmatpush2.msra.mxu0 0.0
    %209 = vmatprep.subr.mxu0 0.0
    %210 = vmatpush2.msra.mxu0 0.0
    %211 = vmatprep.subr.mxu0 0.0
    %212 = vmatpush2.msra.mxu0 0.0
    %213 = vmatprep.subr.mxu0 0.0
    %214 = vmatpush2.msra.mxu0 0.0
    %215 = vmatprep.subr.mxu0 0.0
    %216 = vmatpush2.msra.mxu0 0.0
    %217 = vmatprep.subr.mxu0 0.0
    %218 = vmatpush2.msra.mxu0 0.0
    %219 = vmatprep.subr.mxu0 0.0
    %220 = vmatpush2.msra.mxu0 0.0
    %221 = vmatprep.subr.mxu0 0.0
    %222 = vmatpush2.msra.mxu0 0.0
    %223 = vmatprep.subr.mxu0 0.0
    %224 = vmatpush2.msra.mxu0 0.0
    %225 = vmatprep.mubr.f32.mxu0 0.0
    %226 = vmatmul.mubr.f32.gmra.mxu0 %v159
    %v227 = vpop.f32.mrf.mxu0
    %v228 = vadd.f32 0.0, %v227
    %v229 = vpop.f32.mrf.mxu0
    %230 = vdwg.mxu0
    %v231 = vadd.f32 %v145, %v228
    %v232 = vmul.f32 %v231, 0.5
    %v233 = vsel %vm157, %v231, %v232
    %v234 = vtanh.pop %v233
    %v235 = vmul.f32 %v234, 0.5
    %v236 = vadd.f32 %v235, 0.5
    %v237 = vsel %vm157, %v234, %v236
    %v238 = vmul.f32 %v237, 0.0
    %240 = vrot.lane.b32.xlu0 %v237, 64
    %v241 = vpop.permute.xlu0 %240
    %v243 = vmul.f32 %v237, %v241
    %245 = vrot.lane.b32.xlu0 %v243, 32
    %v246 = vpop.permute.xlu0 %245
    %v248 = vadd.f32 %v238, %v246
    %v249 = vtanh.pop %v248
    %251 = vrot.lane.b32.xlu0 %v249, 64
    %v252 = vpop.permute.xlu0 %251
    %v254 = vmul.f32 %v237, %v252
    %256 = vrot.lane.b32.xlu0 %v254, 32
    %v257 = vpop.permute.xlu0 %256
    %v258 = vsel %vm71, %v257, 0
    %260 = vmatprep.subr.mxu0 0.0
    %261 = vmatpush1.msra.mxu0 0.0
    %262 = vmatprep.subr.mxu0 0.0
    %263 = vmatpush1.msra.mxu0 0.0
    %264 = vmatprep.subr.mxu0 0.0
    %265 = vmatpush1.msra.mxu0 0.0
    %266 = vmatprep.subr.mxu0 0.0
    %267 = vmatpush1.msra.mxu0 0.0
    %268 = vmatprep.subr.mxu0 0.0
    %269 = vmatpush1.msra.mxu0 0.0
    %270 = vmatprep.subr.mxu0 0.0
    %271 = vmatpush1.msra.mxu0 0.0
    %272 = vmatprep.subr.mxu0 0.0
    %273 = vmatpush1.msra.mxu0 0.0
    %274 = vmatprep.subr.mxu0 0.0
    %275 = vmatpush1.msra.mxu0 0.0
    %276 = vmatprep.subr.mxu0 0.0
    %277 = vmatpush1.msra.mxu0 0.0
    %278 = vmatprep.subr.mxu0 0.0
    %279 = vmatpush1.msra.mxu0 0.0
    %280 = vmatprep.subr.mxu0 0.0
    %281 = vmatpush1.msra.mxu0 0.0
    %282 = vmatprep.subr.mxu0 0.0
    %283 = vmatpush1.msra.mxu0 0.0
    %284 = vmatprep.subr.mxu0 0.0
    %285 = vmatpush1.msra.mxu0 %v63
    %286 = vmatprep.subr.mxu0 0.0
    %287 = vmatpush1.msra.mxu0 %v62
    %288 = vmatprep.subr.mxu0 0.0
    %289 = vmatpush1.msra.mxu0 %v61
    %290 = vmatprep.subr.mxu0 0.0
    %291 = vmatpush1.msra.mxu0 %v60
    %292 = vmatprep.subr.mxu0 0.0
    %293 = vmatpush2.msra.mxu0 0.0
    %294 = vmatprep.subr.mxu0 0.0
    %295 = vmatpush2.msra.mxu0 0.0
    %296 = vmatprep.subr.mxu0 0.0
    %297 = vmatpush2.msra.mxu0 0.0
    %298 = vmatprep.subr.mxu0 0.0
    %299 = vmatpush2.msra.mxu0 0.0
    %300 = vmatprep.subr.mxu0 0.0
    %301 = vmatpush2.msra.mxu0 0.0
    %302 = vmatprep.subr.mxu0 0.0
    %303 = vmatpush2.msra.mxu0 0.0
    %304 = vmatprep.subr.mxu0 0.0
    %305 = vmatpush2.msra.mxu0 0.0
    %306 = vmatprep.subr.mxu0 0.0
    %307 = vmatpush2.msra.mxu0 0.0
    %308 = vmatprep.subr.mxu0 0.0
    %309 = vmatpush2.msra.mxu0 0.0
    %310 = vmatprep.subr.mxu0 0.0
    %311 = vmatpush2.msra.mxu0 0.0
    %312 = vmatprep.subr.mxu0 0.0
    %313 = vmatpush2.msra.mxu0 0.0
    %314 = vmatprep.subr.mxu0 0.0
    %315 = vmatpush2.msra.mxu0 0.0
    %316 = vmatprep.subr.mxu0 0.0
    %317 = vmatpush2.msra.mxu0 0.0
    %318 = vmatprep.subr.mxu0 0.0
    %319 = vmatpush2.msra.mxu0 0.0
    %320 = vmatprep.subr.mxu0 0.0
    %321 = vmatpush2.msra.mxu0 0.0
    %322 = vmatprep.subr.mxu0 0.0
    %323 = vmatpush2.msra.mxu0 0.0
    %324 = vmatprep.mubr.f32.mxu0 0.0
    %325 = vmatmul.mubr.f32.gmra.mxu0 %v258
    %v326 = vpop.f32.mrf.mxu0
    %v327 = vadd.f32 0.0, %v326
    %v328 = vpop.f32.mrf.mxu0
    %329 = vdwg.mxu0
    %v331 = vrot.slane %v327, 6
    %v333 = vadd.f32 %v145, %v331
    %v334 = vmul.f32 %v333, 0.5
    %v335 = vsel %vm157, %v333, %v334
    %v336 = vtanh.pop %v335
    %v337 = vmul.f32 %v336, 0.5
    %v338 = vadd.f32 %v337, 0.5
    %v339 = vsel %vm157, %v336, %v338
    %v341 = vrot.slane %v248, 6
    %v343 = vmul.f32 %v339, %v341
    %345 = vrot.lane.b32.xlu0 %v339, 64
    %v346 = vpop.permute.xlu0 %345
    %v348 = vmul.f32 %v339, %v346
    %350 = vrot.lane.b32.xlu0 %v348, 32
    %v351 = vpop.permute.xlu0 %350
    %v353 = vadd.f32 %v343, %v351
    %v354 = vtanh.pop %v353
    %356 = vrot.lane.b32.xlu0 %v354, 64
    %v357 = vpop.permute.xlu0 %356
    %v359 = vmul.f32 %v339, %v357
    %v361 = vrot.slane %v359, 2
    %362 = vrot.lane.b32.xlu0 %v361, 32
    %v363 = vpop.permute.xlu0 %362
    %v364 = vsel %vm71, %v363, 0
    %366 = vmatprep.subr.mxu0 0.0
    %367 = vmatpush1.msra.mxu0 0.0
    %368 = vmatprep.subr.mxu0 0.0
    %369 = vmatpush1.msra.mxu0 0.0
    %370 = vmatprep.subr.mxu0 0.0
    %371 = vmatpush1.msra.mxu0 0.0
    %372 = vmatprep.subr.mxu0 0.0
    %373 = vmatpush1.msra.mxu0 0.0
    %374 = vmatprep.subr.mxu0 0.0
    %375 = vmatpush1.msra.mxu0 0.0
    %376 = vmatprep.subr.mxu0 0.0
    %377 = vmatpush1.msra.mxu0 0.0
    %378 = vmatprep.subr.mxu0 0.0
    %379 = vmatpush1.msra.mxu0 0.0
    %380 = vmatprep.subr.mxu0 0.0
    %381 = vmatpush1.msra.mxu0 0.0
    %382 = vmatprep.subr.mxu0 0.0
    %383 = vmatpush1.msra.mxu0 0.0
    %384 = vmatprep.subr.mxu0 0.0
    %385 = vmatpush1.msra.mxu0 0.0
    %386 = vmatprep.subr.mxu0 0.0
    %387 = vmatpush1.msra.mxu0 0.0
    %388 = vmatprep.subr.mxu0 0.0
    %389 = vmatpush1.msra.mxu0 0.0
    %390 = vmatprep.subr.mxu0 0.0
    %391 = vmatpush1.msra.mxu0 %v63
    %392 = vmatprep.subr.mxu0 0.0
    %393 = vmatpush1.msra.mxu0 %v62
    %394 = vmatprep.subr.mxu0 0.0
    %395 = vmatpush1.msra.mxu0 %v61
    %396 = vmatprep.subr.mxu0 0.0
    %397 = vmatpush1.msra.mxu0 %v60
    %398 = vmatprep.subr.mxu0 0.0
    %399 = vmatpush2.msra.mxu0 0.0
    %400 = vmatprep.subr.mxu0 0.0
    %401 = vmatpush2.msra.mxu0 0.0
    %402 = vmatprep.subr.mxu0 0.0
    %403 = vmatpush2.msra.mxu0 0.0
    %404 = vmatprep.subr.mxu0 0.0
    %405 = vmatpush2.msra.mxu0 0.0
    %406 = vmatprep.subr.mxu0 0.0
    %407 = vmatpush2.msra.mxu0 0.0
    %408 = vmatprep.subr.mxu0 0.0
    %409 = vmatpush2.msra.mxu0 0.0
    %410 = vmatprep.subr.mxu0 0.0
    %411 = vmatpush2.msra.mxu0 0.0
    %412 = vmatprep.subr.mxu0 0.0
    %413 = vmatpush2.msra.mxu0 0.0
    %414 = vmatprep.subr.mxu0 0.0
    %415 = vmatpush2.msra.mxu0 0.0
    %416 = vmatprep.subr.mxu0 0.0
    %417 = vmatpush2.msra.mxu0 0.0
    %418 = vmatprep.subr.mxu0 0.0
    %419 = vmatpush2.msra.mxu0 0.0
    %420 = vmatprep.subr.mxu0 0.0
    %421 = vmatpush2.msra.mxu0 0.0
    %422 = vmatprep.subr.mxu0 0.0
    %423 = vmatpush2.msra.mxu0 0.0
    %424 = vmatprep.subr.mxu0 0.0
    %425 = vmatpush2.msra.mxu0 0.0
    %426 = vmatprep.subr.mxu0 0.0
    %427 = vmatpush2.msra.mxu0 0.0
    %428 = vmatprep.subr.mxu0 0.0
    %429 = vmatpush2.msra.mxu0 0.0
    %430 = vmatprep.mubr.f32.mxu0 0.0
    %431 = vmatmul.mubr.f32.gmra.mxu0 %v364
    %v432 = vpop.f32.mrf.mxu0
    %v433 = vadd.f32 0.0, %v432
    %v434 = vpop.f32.mrf.mxu0
    %435 = vdwg.mxu0
    %v437 = vrot.slane %v433, 4
    %v439 = vadd.f32 %v145, %v437
    %v440 = vmul.f32 %v439, 0.5
    %v441 = vsel %vm157, %v439, %v440
    %v442 = vtanh.pop %v441
    %v443 = vmul.f32 %v442, 0.5
    %v444 = vadd.f32 %v443, 0.5
    %v445 = vsel %vm157, %v442, %v444
    %v447 = vrot.slane %v353, 6
    %v449 = vmul.f32 %v445, %v447
    %451 = vrot.lane.b32.xlu0 %v445, 64
    %v452 = vpop.permute.xlu0 %451
    %v454 = vmul.f32 %v445, %v452
    %456 = vrot.lane.b32.xlu0 %v454, 32
    %v457 = vpop.permute.xlu0 %456
    %v459 = vadd.f32 %v449, %v457
    %v460 = vtanh.pop %v459
    %462 = vrot.lane.b32.xlu0 %v460, 64
    %v463 = vpop.permute.xlu0 %462
    %v465 = vmul.f32 %v445, %v463
    %v467 = vrot.slane %v465, 4
    %468 = vrot.lane.b32.xlu0 %v467, 32
    %v469 = vpop.permute.xlu0 %468
    %v470 = vsel %vm71, %v469, 0
    %472 = vmatprep.subr.mxu0 0.0
    %473 = vmatpush1.msra.mxu0 0.0
    %474 = vmatprep.subr.mxu0 0.0
    %475 = vmatpush1.msra.mxu0 0.0
    %476 = vmatprep.subr.mxu0 0.0
    %477 = vmatpush1.msra.mxu0 0.0
    %478 = vmatprep.subr.mxu0 0.0
    %479 = vmatpush1.msra.mxu0 0.0
    %480 = vmatprep.subr.mxu0 0.0
    %481 = vmatpush1.msra.mxu0 0.0
    %482 = vmatprep.subr.mxu0 0.0
    %483 = vmatpush1.msra.mxu0 0.0
    %484 = vmatprep.subr.mxu0 0.0
    %485 = vmatpush1.msra.mxu0 0.0
    %486 = vmatprep.subr.mxu0 0.0
    %487 = vmatpush1.msra.mxu0 0.0
    %488 = vmatprep.subr.mxu0 0.0
    %489 = vmatpush1.msra.mxu0 0.0
    %490 = vmatprep.subr.mxu0 0.0
    %491 = vmatpush1.msra.mxu0 0.0
    %492 = vmatprep.subr.mxu0 0.0
    %493 = vmatpush1.msra.mxu0 0.0
    %494 = vmatprep.subr.mxu0 0.0
    %495 = vmatpush1.msra.mxu0 0.0
    %496 = vmatprep.subr.mxu0 0.0
    %497 = vmatpush1.msra.mxu0 %v63
    %498 = vmatprep.subr.mxu0 0.0
    %499 = vmatpush1.msra.mxu0 %v62
    %500 = vmatprep.subr.mxu0 0.0
    %501 = vmatpush1.msra.mxu0 %v61
    %502 = vmatprep.subr.mxu0 0.0
    %503 = vmatpush1.msra.mxu0 %v60
    %504 = vmatprep.subr.mxu0 0.0
    %505 = vmatpush2.msra.mxu0 0.0
    %506 = vmatprep.subr.mxu0 0.0
    %507 = vmatpush2.msra.mxu0 0.0
    %508 = vmatprep.subr.mxu0 0.0
    %509 = vmatpush2.msra.mxu0 0.0
    %510 = vmatprep.subr.mxu0 0.0
    %511 = vmatpush2.msra.mxu0 0.0
    %512 = vmatprep.subr.mxu0 0.0
    %513 = vmatpush2.msra.mxu0 0.0
    %514 = vmatprep.subr.mxu0 0.0
    %515 = vmatpush2.msra.mxu0 0.0
    %516 = vmatprep.subr.mxu0 0.0
    %517 = vmatpush2.msra.mxu0 0.0
    %518 = vmatprep.subr.mxu0 0.0
    %519 = vmatpush2.msra.mxu0 0.0
    %520 = vmatprep.subr.mxu0 0.0
    %521 = vmatpush2.msra.mxu0 0.0
    %522 = vmatprep.subr.mxu0 0.0
    %523 = vmatpush2.msra.mxu0 0.0
    %524 = vmatprep.subr.mxu0 0.0
    %525 = vmatpush2.msra.mxu0 0.0
    %526 = vmatprep.subr.mxu0 0.0
    %527 = vmatpush2.msra.mxu0 0.0
    %528 = vmatprep.subr.mxu0 0.0
    %529 = vmatpush2.msra.mxu0 0.0
    %530 = vmatprep.subr.mxu0 0.0
    %531 = vmatpush2.msra.mxu0 0.0
    %532 = vmatprep.subr.mxu0 0.0
    %533 = vmatpush2.msra.mxu0 0.0
    %534 = vmatprep.subr.mxu0 0.0
    %535 = vmatpush2.msra.mxu0 0.0
    %536 = vmatprep.mubr.f32.mxu0 0.0
    %537 = vmatmul.mubr.f32.gmra.mxu0 %v470
    %v538 = vpop.f32.mrf.mxu0
    %v539 = vadd.f32 0.0, %v538
    %v540 = vpop.f32.mrf.mxu0
    %541 = vdwg.mxu0
    %v543 = vrot.slane %v539, 2
    %v545 = vadd.f32 %v145, %v543
    %v546 = vmul.f32 %v545, 0.5
    %v547 = vsel %vm157, %v545, %v546
    %v548 = vtanh.pop %v547
    %v549 = vmul.f32 %v548, 0.5
    %v550 = vadd.f32 %v549, 0.5
    %v551 = vsel %vm157, %v548, %v550
    %v553 = vrot.slane %v459, 6
    %v555 = vmul.f32 %v551, %v553
    %557 = vrot.lane.b32.xlu0 %v551, 64
    %v558 = vpop.permute.xlu0 %557
    %v560 = vmul.f32 %v551, %v558
    %562 = vrot.lane.b32.xlu0 %v560, 32
    %v563 = vpop.permute.xlu0 %562
    %v565 = vadd.f32 %v555, %v563
    %v566 = vtanh.pop %v565
    %568 = vrot.lane.b32.xlu0 %v566, 64
    %v569 = vpop.permute.xlu0 %568
    %v571 = vmul.f32 %v551, %v569
    %v573 = vrot.slane %v571, 6
    %574 = vrot.lane.b32.xlu0 %v573, 32
    %v575 = vpop.permute.xlu0 %574
    %v576 = vsel %vm71, %v575, 0
    %578 = vmatprep.subr.mxu0 0.0
    %579 = vmatpush1.msra.mxu0 0.0
    %580 = vmatprep.subr.mxu0 0.0
    %581 = vmatpush1.msra.mxu0 0.0
    %582 = vmatprep.subr.mxu0 0.0
    %583 = vmatpush1.msra.mxu0 0.0
    %584 = vmatprep.subr.mxu0 0.0
    %585 = vmatpush1.msra.mxu0 0.0
    %586 = vmatprep.subr.mxu0 0.0
    %587 = vmatpush1.msra.mxu0 0.0
    %588 = vmatprep.subr.mxu0 0.0
    %589 = vmatpush1.msra.mxu0 0.0
    %590 = vmatprep.subr.mxu0 0.0
    %591 = vmatpush1.msra.mxu0 0.0
    %592 = vmatprep.subr.mxu0 0.0
    %593 = vmatpush1.msra.mxu0 0.0
    %594 = vmatprep.subr.mxu0 0.0
    %595 = vmatpush1.msra.mxu0 0.0
    %596 = vmatprep.subr.mxu0 0.0
    %597 = vmatpush1.msra.mxu0 0.0
    %598 = vmatprep.subr.mxu0 0.0
    %599 = vmatpush1.msra.mxu0 0.0
    %600 = vmatprep.subr.mxu0 0.0
    %601 = vmatpush1.msra.mxu0 0.0
    %602 = vmatprep.subr.mxu0 0.0
    %603 = vmatpush1.msra.mxu0 %v63
    %604 = vmatprep.subr.mxu0 0.0
    %605 = vmatpush1.msra.mxu0 %v62
    %606 = vmatprep.subr.mxu0 0.0
    %607 = vmatpush1.msra.mxu0 %v61
    %608 = vmatprep.subr.mxu0 0.0
    %609 = vmatpush1.msra.mxu0 %v60
    %610 = vmatprep.subr.mxu0 0.0
    %611 = vmatpush2.msra.mxu0 0.0
    %612 = vmatprep.subr.mxu0 0.0
    %613 = vmatpush2.msra.mxu0 0.0
    %614 = vmatprep.subr.mxu0 0.0
    %615 = vmatpush2.msra.mxu0 0.0
    %616 = vmatprep.subr.mxu0 0.0
    %617 = vmatpush2.msra.mxu0 0.0
    %618 = vmatprep.subr.mxu0 0.0
    %619 = vmatpush2.msra.mxu0 0.0
    %620 = vmatprep.subr.mxu0 0.0
    %621 = vmatpush2.msra.mxu0 0.0
    %622 = vmatprep.subr.mxu0 0.0
    %623 = vmatpush2.msra.mxu0 0.0
    %624 = vmatprep.subr.mxu0 0.0
    %625 = vmatpush2.msra.mxu0 0.0
    %626 = vmatprep.subr.mxu0 0.0
    %627 = vmatpush2.msra.mxu0 0.0
    %628 = vmatprep.subr.mxu0 0.0
    %629 = vmatpush2.msra.mxu0 0.0
    %630 = vmatprep.subr.mxu0 0.0
    %631 = vmatpush2.msra.mxu0 0.0
    %632 = vmatprep.subr.mxu0 0.0
    %633 = vmatpush2.msra.mxu0 0.0
    %634 = vmatprep.subr.mxu0 0.0
    %635 = vmatpush2.msra.mxu0 0.0
    %636 = vmatprep.subr.mxu0 0.0
    %637 = vmatpush2.msra.mxu0 0.0
    %638 = vmatprep.subr.mxu0 0.0
    %639 = vmatpush2.msra.mxu0 0.0
    %640 = vmatprep.subr.mxu0 0.0
    %641 = vmatpush2.msra.mxu0 0.0
    %642 = vmatprep.mubr.f32.mxu0 0.0
    %643 = vmatmul.mubr.f32.gmra.mxu0 %v576
    %v644 = vpop.f32.mrf.mxu0
    %v645 = vadd.f32 0.0, %v644
    %v646 = vpop.f32.mrf.mxu0
    %647 = vdwg.mxu0
    %v648 = vadd.f32 %v150, %v645
    %v649 = vmul.f32 %v648, 0.5
    %v650 = vsel %vm157, %v648, %v649
    %v651 = vtanh.pop %v650
    %v652 = vmul.f32 %v651, 0.5
    %v653 = vadd.f32 %v652, 0.5
    %v654 = vsel %vm157, %v651, %v653
    %v656 = vrot.slane %v565, 6
    %v658 = vmul.f32 %v654, %v656
    %660 = vrot.lane.b32.xlu0 %v654, 64
    %v661 = vpop.permute.xlu0 %660
    %v663 = vmul.f32 %v654, %v661
    %665 = vrot.lane.b32.xlu0 %v663, 32
    %v666 = vpop.permute.xlu0 %665
    %v668 = vadd.f32 %v658, %v666
    %v669 = vtanh.pop %v668
    %671 = vrot.lane.b32.xlu0 %v669, 64
    %v672 = vpop.permute.xlu0 %671
    %v674 = vmul.f32 %v654, %v672
    %676 = vrot.lane.b32.xlu0 %v674, 32
    %v677 = vpop.permute.xlu0 %676
    %v678 = vsel %vm71, %v677, 0
    %680 = vmatprep.subr.mxu0 0.0
    %681 = vmatpush1.msra.mxu0 0.0
    %682 = vmatprep.subr.mxu0 0.0
    %683 = vmatpush1.msra.mxu0 0.0
    %684 = vmatprep.subr.mxu0 0.0
    %685 = vmatpush1.msra.mxu0 0.0
    %686 = vmatprep.subr.mxu0 0.0
    %687 = vmatpush1.msra.mxu0 0.0
    %688 = vmatprep.subr.mxu0 0.0
    %689 = vmatpush1.msra.mxu0 0.0
    %690 = vmatprep.subr.mxu0 0.0
    %691 = vmatpush1.msra.mxu0 0.0
    %692 = vmatprep.subr.mxu0 0.0
    %693 = vmatpush1.msra.mxu0 0.0
    %694 = vmatprep.subr.mxu0 0.0
    %695 = vmatpush1.msra.mxu0 0.0
    %696 = vmatprep.subr.mxu0 0.0
    %697 = vmatpush1.msra.mxu0 0.0
    %698 = vmatprep.subr.mxu0 0.0
    %699 = vmatpush1.msra.mxu0 0.0
    %700 = vmatprep.subr.mxu0 0.0
    %701 = vmatpush1.msra.mxu0 0.0
    %702 = vmatprep.subr.mxu0 0.0
    %703 = vmatpush1.msra.mxu0 0.0
    %704 = vmatprep.subr.mxu0 0.0
    %705 = vmatpush1.msra.mxu0 %v63
    %706 = vmatprep.subr.mxu0 0.0
    %707 = vmatpush1.msra.mxu0 %v62
    %708 = vmatprep.subr.mxu0 0.0
    %709 = vmatpush1.msra.mxu0 %v61
    %710 = vmatprep.subr.mxu0 0.0
    %711 = vmatpush1.msra.mxu0 %v60
    %712 = vmatprep.subr.mxu0 0.0
    %713 = vmatpush2.msra.mxu0 0.0
    %714 = vmatprep.subr.mxu0 0.0
    %715 = vmatpush2.msra.mxu0 0.0
    %716 = vmatprep.subr.mxu0 0.0
    %717 = vmatpush2.msra.mxu0 0.0
    %718 = vmatprep.subr.mxu0 0.0
    %719 = vmatpush2.msra.mxu0 0.0
    %720 = vmatprep.subr.mxu0 0.0
    %721 = vmatpush2.msra.mxu0 0.0
    %722 = vmatprep.subr.mxu0 0.0
    %723 = vmatpush2.msra.mxu0 0.0
    %724 = vmatprep.subr.mxu0 0.0
    %725 = vmatpush2.msra.mxu0 0.0
    %726 = vmatprep.subr.mxu0 0.0
    %727 = vmatpush2.msra.mxu0 0.0
    %728 = vmatprep.subr.mxu0 0.0
    %729 = vmatpush2.msra.mxu0 0.0
    %730 = vmatprep.subr.mxu0 0.0
    %731 = vmatpush2.msra.mxu0 0.0
    %732 = vmatprep.subr.mxu0 0.0
    %733 = vmatpush2.msra.mxu0 0.0
    %734 = vmatprep.subr.mxu0 0.0
    %735 = vmatpush2.msra.mxu0 0.0
    %736 = vmatprep.subr.mxu0 0.0
    %737 = vmatpush2.msra.mxu0 0.0
    %738 = vmatprep.subr.mxu0 0.0
    %739 = vmatpush2.msra.mxu0 0.0
    %740 = vmatprep.subr.mxu0 0.0
    %741 = vmatpush2.msra.mxu0 0.0
    %742 = vmatprep.subr.mxu0 0.0
    %743 = vmatpush2.msra.mxu0 0.0
    %744 = vmatprep.mubr.f32.mxu0 0.0
    %745 = vmatmul.mubr.f32.gmra.mxu0 %v678
    %v746 = vpop.f32.mrf.mxu0
    %v747 = vadd.f32 0.0, %v746
    %v748 = vpop.f32.mrf.mxu0
    %749 = vdwg.mxu0
    %v751 = vrot.slane %v747, 6
    %v753 = vadd.f32 %v150, %v751
    %v754 = vmul.f32 %v753, 0.5
    %v755 = vsel %vm157, %v753, %v754
    %v756 = vtanh.pop %v755
    %v757 = vmul.f32 %v756, 0.5
    %v758 = vadd.f32 %v757, 0.5
    %v759 = vsel %vm157, %v756, %v758
    %v761 = vrot.slane %v668, 6
    %v763 = vmul.f32 %v759, %v761
    %765 = vrot.lane.b32.xlu0 %v759, 64
    %v766 = vpop.permute.xlu0 %765
    %v768 = vmul.f32 %v759, %v766
    %770 = vrot.lane.b32.xlu0 %v768, 32
    %v771 = vpop.permute.xlu0 %770
    %v773 = vadd.f32 %v763, %v771
    %v774 = vtanh.pop %v773
    %776 = vrot.lane.b32.xlu0 %v774, 64
    %v777 = vpop.permute.xlu0 %776
    %v779 = vmul.f32 %v759, %v777
    %v781 = vrot.slane %v779, 2
    %782 = vrot.lane.b32.xlu0 %v781, 32
    %v783 = vpop.permute.xlu0 %782
    %v784 = vsel %vm71, %v783, 0
    %786 = vmatprep.subr.mxu0 0.0
    %787 = vmatpush1.msra.mxu0 0.0
    %788 = vmatprep.subr.mxu0 0.0
    %789 = vmatpush1.msra.mxu0 0.0
    %790 = vmatprep.subr.mxu0 0.0
    %791 = vmatpush1.msra.mxu0 0.0
    %792 = vmatprep.subr.mxu0 0.0
    %793 = vmatpush1.msra.mxu0 0.0
    %794 = vmatprep.subr.mxu0 0.0
    %795 = vmatpush1.msra.mxu0 0.0
    %796 = vmatprep.subr.mxu0 0.0
    %797 = vmatpush1.msra.mxu0 0.0
    %798 = vmatprep.subr.mxu0 0.0
    %799 = vmatpush1.msra.mxu0 0.0
    %800 = vmatprep.subr.mxu0 0.0
    %801 = vmatpush1.msra.mxu0 0.0
    %802 = vmatprep.subr.mxu0 0.0
    %803 = vmatpush1.msra.mxu0 0.0
    %804 = vmatprep.subr.mxu0 0.0
    %805 = vmatpush1.msra.mxu0 0.0
    %806 = vmatprep.subr.mxu0 0.0
    %807 = vmatpush1.msra.mxu0 0.0
    %808 = vmatprep.subr.mxu0 0.0
    %809 = vmatpush1.msra.mxu0 0.0
    %810 = vmatprep.subr.mxu0 0.0
    %811 = vmatpush1.msra.mxu0 %v63
    %812 = vmatprep.subr.mxu0 0.0
    %813 = vmatpush1.msra.mxu0 %v62
    %814 = vmatprep.subr.mxu0 0.0
    %815 = vmatpush1.msra.mxu0 %v61
    %816 = vmatprep.subr.mxu0 0.0
    %817 = vmatpush1.msra.mxu0 %v60
    %818 = vmatprep.subr.mxu0 0.0
    %819 = vmatpush2.msra.mxu0 0.0
    %820 = vmatprep.subr.mxu0 0.0
    %821 = vmatpush2.msra.mxu0 0.0
    %822 = vmatprep.subr.mxu0 0.0
    %823 = vmatpush2.msra.mxu0 0.0
    %824 = vmatprep.subr.mxu0 0.0
    %825 = vmatpush2.msra.mxu0 0.0
    %826 = vmatprep.subr.mxu0 0.0
    %827 = vmatpush2.msra.mxu0 0.0
    %828 = vmatprep.subr.mxu0 0.0
    %829 = vmatpush2.msra.mxu0 0.0
    %830 = vmatprep.subr.mxu0 0.0
    %831 = vmatpush2.msra.mxu0 0.0
    %832 = vmatprep.subr.mxu0 0.0
    %833 = vmatpush2.msra.mxu0 0.0
    %834 = vmatprep.subr.mxu0 0.0
    %835 = vmatpush2.msra.mxu0 0.0
    %836 = vmatprep.subr.mxu0 0.0
    %837 = vmatpush2.msra.mxu0 0.0
    %838 = vmatprep.subr.mxu0 0.0
    %839 = vmatpush2.msra.mxu0 0.0
    %840 = vmatprep.subr.mxu0 0.0
    %841 = vmatpush2.msra.mxu0 0.0
    %842 = vmatprep.subr.mxu0 0.0
    %843 = vmatpush2.msra.mxu0 0.0
    %844 = vmatprep.subr.mxu0 0.0
    %845 = vmatpush2.msra.mxu0 0.0
    %846 = vmatprep.subr.mxu0 0.0
    %847 = vmatpush2.msra.mxu0 0.0
    %848 = vmatprep.subr.mxu0 0.0
    %849 = vmatpush2.msra.mxu0 0.0
    %850 = vmatprep.mubr.f32.mxu0 0.0
    %851 = vmatmul.mubr.f32.gmra.mxu0 %v784
    %v852 = vpop.f32.mrf.mxu0
    %v853 = vadd.f32 0.0, %v852
    %v854 = vpop.f32.mrf.mxu0
    %855 = vdwg.mxu0
    %v857 = vrot.slane %v853, 4
    %v859 = vadd.f32 %v150, %v857
    %v860 = vmul.f32 %v859, 0.5
    %v861 = vsel %vm157, %v859, %v860
    %v862 = vtanh.pop %v861
    %v863 = vmul.f32 %v862, 0.5
    %v864 = vadd.f32 %v863, 0.5
    %v865 = vsel %vm157, %v862, %v864
    %v867 = vrot.slane %v773, 6
    %v869 = vmul.f32 %v865, %v867
    %871 = vrot.lane.b32.xlu0 %v865, 64
    %v872 = vpop.permute.xlu0 %871
    %v874 = vmul.f32 %v865, %v872
    %876 = vrot.lane.b32.xlu0 %v874, 32
    %v877 = vpop.permute.xlu0 %876
    %v879 = vadd.f32 %v869, %v877
    %v880 = vtanh.pop %v879
    %882 = vrot.lane.b32.xlu0 %v880, 64
    %v883 = vpop.permute.xlu0 %882
    %v885 = vmul.f32 %v865, %v883
    %v887 = vrot.slane %v885, 4
    %888 = vrot.lane.b32.xlu0 %v887, 32
    %v889 = vpop.permute.xlu0 %888
    %v890 = vsel %vm71, %v889, 0
    %892 = vmatprep.subr.mxu0 0.0
    %893 = vmatpush1.msra.mxu0 0.0
    %894 = vmatprep.subr.mxu0 0.0
    %895 = vmatpush1.msra.mxu0 0.0
    %896 = vmatprep.subr.mxu0 0.0
    %897 = vmatpush1.msra.mxu0 0.0
    %898 = vmatprep.subr.mxu0 0.0
    %899 = vmatpush1.msra.mxu0 0.0
    %900 = vmatprep.subr.mxu0 0.0
    %901 = vmatpush1.msra.mxu0 0.0
    %902 = vmatprep.subr.mxu0 0.0
    %903 = vmatpush1.msra.mxu0 0.0
    %904 = vmatprep.subr.mxu0 0.0
    %905 = vmatpush1.msra.mxu0 0.0
    %906 = vmatprep.subr.mxu0 0.0
    %907 = vmatpush1.msra.mxu0 0.0
    %908 = vmatprep.subr.mxu0 0.0
    %909 = vmatpush1.msra.mxu0 0.0
    %910 = vmatprep.subr.mxu0 0.0
    %911 = vmatpush1.msra.mxu0 0.0
    %912 = vmatprep.subr.mxu0 0.0
    %913 = vmatpush1.msra.mxu0 0.0
    %914 = vmatprep.subr.mxu0 0.0
    %915 = vmatpush1.msra.mxu0 0.0
    %916 = vmatprep.subr.mxu0 0.0
    %917 = vmatpush1.msra.mxu0 %v63
    %918 = vmatprep.subr.mxu0 0.0
    %919 = vmatpush1.msra.mxu0 %v62
    %920 = vmatprep.subr.mxu0 0.0
    %921 = vmatpush1.msra.mxu0 %v61
    %922 = vmatprep.subr.mxu0 0.0
    %923 = vmatpush1.msra.mxu0 %v60
    %924 = vmatprep.subr.mxu0 0.0
    %925 = vmatpush2.msra.mxu0 0.0
    %926 = vmatprep.subr.mxu0 0.0
    %927 = vmatpush2.msra.mxu0 0.0
    %928 = vmatprep.subr.mxu0 0.0
    %929 = vmatpush2.msra.mxu0 0.0
    %930 = vmatprep.subr.mxu0 0.0
    %931 = vmatpush2.msra.mxu0 0.0
    %932 = vmatprep.subr.mxu0 0.0
    %933 = vmatpush2.msra.mxu0 0.0
    %934 = vmatprep.subr.mxu0 0.0
    %935 = vmatpush2.msra.mxu0 0.0
    %936 = vmatprep.subr.mxu0 0.0
    %937 = vmatpush2.msra.mxu0 0.0
    %938 = vmatprep.subr.mxu0 0.0
    %939 = vmatpush2.msra.mxu0 0.0
    %940 = vmatprep.subr.mxu0 0.0
    %941 = vmatpush2.msra.mxu0 0.0
    %942 = vmatprep.subr.mxu0 0.0
    %943 = vmatpush2.msra.mxu0 0.0
    %944 = vmatprep.subr.mxu0 0.0
    %945 = vmatpush2.msra.mxu0 0.0
    %946 = vmatprep.subr.mxu0 0.0
    %947 = vmatpush2.msra.mxu0 0.0
    %948 = vmatprep.subr.mxu0 0.0
    %949 = vmatpush2.msra.mxu0 0.0
    %950 = vmatprep.subr.mxu0 0.0
    %951 = vmatpush2.msra.mxu0 0.0
    %952 = vmatprep.subr.mxu0 0.0
    %953 = vmatpush2.msra.mxu0 0.0
    %954 = vmatprep.subr.mxu0 0.0
    %955 = vmatpush2.msra.mxu0 0.0
    %956 = vmatprep.mubr.f32.mxu0 0.0
    %957 = vmatmul.mubr.f32.gmra.mxu0 %v890
    %v958 = vpop.f32.mrf.mxu0
    %v959 = vadd.f32 0.0, %v958
    %v960 = vpop.f32.mrf.mxu0
    %961 = vdwg.mxu0
    %v963 = vrot.slane %v959, 2
    %v965 = vadd.f32 %v150, %v963
    %v966 = vmul.f32 %v965, 0.5
    %v967 = vsel %vm157, %v965, %v966
    %v968 = vtanh.pop %v967
    %v969 = vmul.f32 %v968, 0.5
    %v970 = vadd.f32 %v969, 0.5
    %v971 = vsel %vm157, %v968, %v970
    %v973 = vrot.slane %v879, 6
    %v975 = vmul.f32 %v971, %v973
    %977 = vrot.lane.b32.xlu0 %v971, 64
    %v978 = vpop.permute.xlu0 %977
    %v980 = vmul.f32 %v971, %v978
    %982 = vrot.lane.b32.xlu0 %v980, 32
    %v983 = vpop.permute.xlu0 %982
    %v985 = vadd.f32 %v975, %v983
    %v986 = vtanh.pop %v985
    %988 = vrot.lane.b32.xlu0 %v986, 64
    %v989 = vpop.permute.xlu0 %988
    %v991 = vmul.f32 %v971, %v989
    %v992 = vld [vmem:[#allocation7] sm:$0xff]
    %v993 = vld [vmem:[#allocation7 + $0x8] sm:$0xff]
    %v994 = vld [vmem:[#allocation7 + $0x10] sm:$0xff]
    %v995 = vld [vmem:[#allocation7 + $0x18] sm:$0xff]
    %v996 = vld [vmem:[#allocation7 + $0x20] sm:$0x1]
    %v997 = vlaneseq
    %v998 = vshrl.u32 %v997, 7
    %v999 = vsub.s32 0, %v998
    %v1000 = vrot.slane %v996, %v999
    %v1002 = vrot.slane %v991, 6
    %1003 = vrot.lane.b32.xlu0 %v1002, 32
    %v1004 = vpop.permute.xlu0 %1003
    %v1005 = vsel %vm71, %v1004, 0
    %1007 = vmatprep.subr.mxu0 0.0
    %1008 = vmatpush1.msra.mxu0 0.0
    %1009 = vmatprep.subr.mxu0 0.0
    %1010 = vmatpush1.msra.mxu0 0.0
    %1011 = vmatprep.subr.mxu0 0.0
    %1012 = vmatpush1.msra.mxu0 0.0
    %1013 = vmatprep.subr.mxu0 0.0
    %1014 = vmatpush1.msra.mxu0 0.0
    %1015 = vmatprep.subr.mxu0 0.0
    %1016 = vmatpush1.msra.mxu0 0.0
    %1017 = vmatprep.subr.mxu0 0.0
    %1018 = vmatpush1.msra.mxu0 0.0
    %1019 = vmatprep.subr.mxu0 0.0
    %1020 = vmatpush1.msra.mxu0 0.0
    %1021 = vmatprep.subr.mxu0 0.0
    %1022 = vmatpush1.msra.mxu0 0.0
    %1023 = vmatprep.subr.mxu0 0.0
    %1024 = vmatpush1.msra.mxu0 0.0
    %1025 = vmatprep.subr.mxu0 0.0
    %1026 = vmatpush1.msra.mxu0 0.0
    %1027 = vmatprep.subr.mxu0 0.0
    %1028 = vmatpush1.msra.mxu0 0.0
    %1029 = vmatprep.subr.mxu0 0.0
    %1030 = vmatpush1.msra.mxu0 0.0
    %1031 = vmatprep.subr.mxu0 0.0
    %1032 = vmatpush1.msra.mxu0 %v995
    %1033 = vmatprep.subr.mxu0 0.0
    %1034 = vmatpush1.msra.mxu0 %v994
    %1035 = vmatprep.subr.mxu0 0.0
    %1036 = vmatpush1.msra.mxu0 %v993
    %1037 = vmatprep.subr.mxu0 0.0
    %1038 = vmatpush1.msra.mxu0 %v992
    %1039 = vmatprep.subr.mxu0 0.0
    %1040 = vmatpush2.msra.mxu0 0.0
    %1041 = vmatprep.subr.mxu0 0.0
    %1042 = vmatpush2.msra.mxu0 0.0
    %1043 = vmatprep.subr.mxu0 0.0
    %1044 = vmatpush2.msra.mxu0 0.0
    %1045 = vmatprep.subr.mxu0 0.0
    %1046 = vmatpush2.msra.mxu0 0.0
    %1047 = vmatprep.subr.mxu0 0.0
    %1048 = vmatpush2.msra.mxu0 0.0
    %1049 = vmatprep.subr.mxu0 0.0
    %1050 = vmatpush2.msra.mxu0 0.0
    %1051 = vmatprep.subr.mxu0 0.0
    %1052 = vmatpush2.msra.mxu0 0.0
    %1053 = vmatprep.subr.mxu0 0.0
    %1054 = vmatpush2.msra.mxu0 0.0
    %1055 = vmatprep.subr.mxu0 0.0
    %1056 = vmatpush2.msra.mxu0 0.0
    %1057 = vmatprep.subr.mxu0 0.0
    %1058 = vmatpush2.msra.mxu0 0.0
    %1059 = vmatprep.subr.mxu0 0.0
    %1060 = vmatpush2.msra.mxu0 0.0
    %1061 = vmatprep.subr.mxu0 0.0
    %1062 = vmatpush2.msra.mxu0 0.0
    %1063 = vmatprep.subr.mxu0 0.0
    %1064 = vmatpush2.msra.mxu0 0.0
    %1065 = vmatprep.subr.mxu0 0.0
    %1066 = vmatpush2.msra.mxu0 0.0
    %1067 = vmatprep.subr.mxu0 0.0
    %1068 = vmatpush2.msra.mxu0 0.0
    %1069 = vmatprep.subr.mxu0 0.0
    %1070 = vmatpush2.msra.mxu0 0.0
    %1071 = vmatprep.mubr.f32.mxu0 0.0
    %1072 = vmatmul.mubr.f32.gmra.mxu0 %v1005
    %v1073 = vpop.f32.mrf.mxu0
    %v1074 = vadd.f32 %v1000, %v1073
    %v1075 = vpop.f32.mrf.mxu0
    %1076 = vdwg.mxu0
    %v1077 = vmax.f32 %v1074, 0.0
    %v1078 = vld [vmem:[#allocation7 + $0x28] sm:$0xff]
    %v1079 = vld [vmem:[#allocation7 + $0x30] sm:$0xff]
    %v1080 = vld [vmem:[#allocation7 + $0x38] sm:$0xff]
    %v1081 = vld [vmem:[#allocation7 + $0x40] sm:$0xff]
    %v1082 = vld [vmem:[#allocation7 + $0x48] sm:$0x1]
    %v1083 = vlaneseq
    %v1084 = vshrl.u32 %v1083, 7
    %v1085 = vsub.s32 0, %v1084
    %v1086 = vrot.slane %v1082, %v1085
    %v1088 = vsel %vm71, %v1077, 0
    %1090 = vmatprep.subr.mxu0 0.0
    %1091 = vmatpush1.msra.mxu0 0.0
    %1092 = vmatprep.subr.mxu0 0.0
    %1093 = vmatpush1.msra.mxu0 0.0
    %1094 = vmatprep.subr.mxu0 0.0
    %1095 = vmatpush1.msra.mxu0 0.0
    %1096 = vmatprep.subr.mxu0 0.0
    %1097 = vmatpush1.msra.mxu0 0.0
    %1098 = vmatprep.subr.mxu0 0.0
    %1099 = vmatpush1.msra.mxu0 0.0
    %1100 = vmatprep.subr.mxu0 0.0
    %1101 = vmatpush1.msra.mxu0 0.0
    %1102 = vmatprep.subr.mxu0 0.0
    %1103 = vmatpush1.msra.mxu0 0.0
    %1104 = vmatprep.subr.mxu0 0.0
    %1105 = vmatpush1.msra.mxu0 0.0
    %1106 = vmatprep.subr.mxu0 0.0
    %1107 = vmatpush1.msra.mxu0 0.0
    %1108 = vmatprep.subr.mxu0 0.0
    %1109 = vmatpush1.msra.mxu0 0.0
    %1110 = vmatprep.subr.mxu0 0.0
    %1111 = vmatpush1.msra.mxu0 0.0
    %1112 = vmatprep.subr.mxu0 0.0
    %1113 = vmatpush1.msra.mxu0 0.0
    %1114 = vmatprep.subr.mxu0 0.0
    %1115 = vmatpush1.msra.mxu0 %v1081
    %1116 = vmatprep.subr.mxu0 0.0
    %1117 = vmatpush1.msra.mxu0 %v1080
    %1118 = vmatprep.subr.mxu0 0.0
    %1119 = vmatpush1.msra.mxu0 %v1079
    %1120 = vmatprep.subr.mxu0 0.0
    %1121 = vmatpush1.msra.mxu0 %v1078
    %1122 = vmatprep.subr.mxu0 0.0
    %1123 = vmatpush2.msra.mxu0 0.0
    %1124 = vmatprep.subr.mxu0 0.0
    %1125 = vmatpush2.msra.mxu0 0.0
    %1126 = vmatprep.subr.mxu0 0.0
    %1127 = vmatpush2.msra.mxu0 0.0
    %1128 = vmatprep.subr.mxu0 0.0
    %1129 = vmatpush2.msra.mxu0 0.0
    %1130 = vmatprep.subr.mxu0 0.0
    %1131 = vmatpush2.msra.mxu0 0.0
    %1132 = vmatprep.subr.mxu0 0.0
    %1133 = vmatpush2.msra.mxu0 0.0
    %1134 = vmatprep.subr.mxu0 0.0
    %1135 = vmatpush2.msra.mxu0 0.0
    %1136 = vmatprep.subr.mxu0 0.0
    %1137 = vmatpush2.msra.mxu0 0.0
    %1138 = vmatprep.subr.mxu0 0.0
    %1139 = vmatpush2.msra.mxu0 0.0
    %1140 = vmatprep.subr.mxu0 0.0
    %1141 = vmatpush2.msra.mxu0 0.0
    %1142 = vmatprep.subr.mxu0 0.0
    %1143 = vmatpush2.msra.mxu0 0.0
    %1144 = vmatprep.subr.mxu0 0.0
    %1145 = vmatpush2.msra.mxu0 0.0
    %1146 = vmatprep.subr.mxu0 0.0
    %1147 = vmatpush2.msra.mxu0 0.0
    %1148 = vmatprep.subr.mxu0 0.0
    %1149 = vmatpush2.msra.mxu0 0.0
    %1150 = vmatprep.subr.mxu0 0.0
    %1151 = vmatpush2.msra.mxu0 0.0
    %1152 = vmatprep.subr.mxu0 0.0
    %1153 = vmatpush2.msra.mxu0 0.0
    %1154 = vmatprep.mubr.f32.mxu0 0.0
    %1155 = vmatmul.mubr.f32.gmra.mxu0 %v1088
    %v1156 = vpop.f32.mrf.mxu0
    %v1157 = vadd.f32 %v1086, %v1156
    %v1158 = vpop.f32.mrf.mxu0
    %1159 = vdwg.mxu0
    %v1160 = vmax.f32 %v1157, 0.0
    %v1161 = vld [vmem:[#allocation7 + $0x50] sm:$0xff]
    %v1162 = vld [vmem:[#allocation7 + $0x58] sm:$0xff]
    %v1163 = vld [vmem:[#allocation7 + $0x60] sm:$0xff]
    %v1164 = vld [vmem:[#allocation7 + $0x68] sm:$0xff]
    %v1165 = vld [vmem:[#allocation7 + $0x70] sm:$0xff]
    %v1166 = vld [vmem:[#allocation7 + $0x78] sm:$0xff]
    %v1167 = vld [vmem:[#allocation7 + $0x80] sm:$0xff]
    %v1168 = vld [vmem:[#allocation7 + $0x88] sm:$0xff]
    %v1169 = vld [vmem:[#allocation7 + $0x90] sm:$0x1]
    %v1170 = vlaneseq
    %v1171 = vshrl.u32 %v1170, 7
    %v1172 = vsub.s32 0, %v1171
    %v1173 = vrot.slane %v1169, %v1172
    %vm1174 = vcmask 523264
    %v1176 = vsel %vm1174, %v1160, 0
    %1178 = vmatprep.subr.mxu0 0.0
    %1179 = vmatpush1.msra.mxu0 0.0
    %1180 = vmatprep.subr.mxu0 0.0
    %1181 = vmatpush1.msra.mxu0 0.0
    %1182 = vmatprep.subr.mxu0 0.0
    %1183 = vmatpush1.msra.mxu0 0.0
    %1184 = vmatprep.subr.mxu0 0.0
    %1185 = vmatpush1.msra.mxu0 0.0
    %1186 = vmatprep.subr.mxu0 0.0
    %1187 = vmatpush1.msra.mxu0 0.0
    %1188 = vmatprep.subr.mxu0 0.0
    %1189 = vmatpush1.msra.mxu0 0.0
    %1190 = vmatprep.subr.mxu0 0.0
    %1191 = vmatpush1.msra.mxu0 0.0
    %1192 = vmatprep.subr.mxu0 0.0
    %1193 = vmatpush1.msra.mxu0 0.0
    %1194 = vmatprep.subr.mxu0 0.0
    %1195 = vmatpush1.msra.mxu0 %v1168
    %1196 = vmatprep.subr.mxu0 0.0
    %1197 = vmatpush1.msra.mxu0 %v1167
    %1198 = vmatprep.subr.mxu0 0.0
    %1199 = vmatpush1.msra.mxu0 %v1166
    %1200 = vmatprep.subr.mxu0 0.0
    %1201 = vmatpush1.msra.mxu0 %v1165
    %1202 = vmatprep.subr.mxu0 0.0
    %1203 = vmatpush1.msra.mxu0 %v1164
    %1204 = vmatprep.subr.mxu0 0.0
    %1205 = vmatpush1.msra.mxu0 %v1163
    %1206 = vmatprep.subr.mxu0 0.0
    %1207 = vmatpush1.msra.mxu0 %v1162
    %1208 = vmatprep.subr.mxu0 0.0
    %1209 = vmatpush1.msra.mxu0 %v1161
    %1210 = vmatprep.subr.mxu0 0.0
    %1211 = vmatpush2.msra.mxu0 0.0
    %1212 = vmatprep.subr.mxu0 0.0
    %1213 = vmatpush2.msra.mxu0 0.0
    %1214 = vmatprep.subr.mxu0 0.0
    %1215 = vmatpush2.msra.mxu0 0.0
    %1216 = vmatprep.subr.mxu0 0.0
    %1217 = vmatpush2.msra.mxu0 0.0
    %1218 = vmatprep.subr.mxu0 0.0
    %1219 = vmatpush2.msra.mxu0 0.0
    %1220 = vmatprep.subr.mxu0 0.0
    %1221 = vmatpush2.msra.mxu0 0.0
    %1222 = vmatprep.subr.mxu0 0.0
    %1223 = vmatpush2.msra.mxu0 0.0
    %1224 = vmatprep.subr.mxu0 0.0
    %1225 = vmatpush2.msra.mxu0 0.0
    %1226 = vmatprep.subr.mxu0 0.0
    %1227 = vmatpush2.msra.mxu0 0.0
    %1228 = vmatprep.subr.mxu0 0.0
    %1229 = vmatpush2.msra.mxu0 0.0
    %1230 = vmatprep.subr.mxu0 0.0
    %1231 = vmatpush2.msra.mxu0 0.0
    %1232 = vmatprep.subr.mxu0 0.0
    %1233 = vmatpush2.msra.mxu0 0.0
    %1234 = vmatprep.subr.mxu0 0.0
    %1235 = vmatpush2.msra.mxu0 0.0
    %1236 = vmatprep.subr.mxu0 0.0
    %1237 = vmatpush2.msra.mxu0 0.0
    %1238 = vmatprep.subr.mxu0 0.0
    %1239 = vmatpush2.msra.mxu0 0.0
    %1240 = vmatprep.subr.mxu0 0.0
    %1241 = vmatpush2.msra.mxu0 0.0
    %1242 = vmatprep.mubr.f32.mxu0 0.0
    %1243 = vmatmul.mubr.f32.gmra.mxu0 %v1176
    %v1244 = vpop.f32.mrf.mxu0
    %v1245 = vadd.f32 %v1173, %v1244
    %v1246 = vpop.f32.mrf.mxu0
    %1247 = vdwg.mxu0
    %1248 = vst [vmem:[#allocation8] sm:$0x3] %v1245
    // Predicated region
    $region26: #{tpu_custom_call.1} parent=1 // pred_check
      _
    $region27: #{tpu_custom_call.1} parent=1 // pred_check_branch
      %1250 = sbr.rel (0) target = $region29
    $region28: #{tpu_custom_call.1} parent=1 // pred_region
      %s1252 = ssub.s32 32, 32
      %1253 = vsyncadd [#allocation4], %s1252
      %s1255 = sshll.u32 [#allocation8], 4
      %s1256 = int_to_ptr.vmem [resolvable:$true] %s1255
      %1258 = dma.vmem_to_hbm [thread:$0]  %s1256, 32, %s3, [#allocation4]
    $region29: #{tpu_custom_call.1} parent=1 // pred_fallthru
      _
    // Predicated region
    $region30: #{tpu_custom_call.1} parent=1 // pred_check
      _
    $region31: #{tpu_custom_call.1} parent=1 // pred_check_branch
      %1260 = sbr.rel (0) target = $region33
    $region32: #{tpu_custom_call.1} parent=1 // pred_region
      %1261 = dma.done [#allocation4], 32
    $region33: #{tpu_custom_call.1} parent=1 // pred_fallthru
      _
    %1262 = vsyncpa [#allocation3], 1
    %1263 = vsyncpa [#allocation6], 1
    %1264 = vsyncpa [#allocation4], 1

</llo_original>
